<compile_context>
chip_gen: v7x
topology: tpu7x:2x2x1
jax: 0.10.0
libtpu: 0.0.40
codegen_flags: <defaults>
</compile_context>

<pallas_src>
import jax
import jax.numpy as jnp
from jax.experimental import pallas as pl
from jax.experimental.pallas import tpu as pltpu


# ---------------------------------------------------------------------------
# Pallas kernel: fused linear(+folded BN) -> ReLU -> per-voxel max -> concat
# ---------------------------------------------------------------------------
def _vfe_kernel(x_ref, w_ref, b_ref, o_ref):
    # x_ref: (TB*Vp, Cin)   w_ref: (Cin, U)   b_ref: (1, U)   o_ref: (TB, Vp*2U)
    tb = o_ref.shape[0]
    u = w_ref.shape[1]
    vp = x_ref.shape[0] // tb

    # Single-shot MXU matmul with f32 accumulation, folded-BN shift, ReLU.
    y = jnp.dot(x_ref[...], w_ref[...], preferred_element_type=jnp.float32)
    p = jnp.maximum(y + b_ref[...].astype(jnp.float32), 0.0)        # (TB*Vp, U)

    # Split (voxel*point) rows back into (voxel, point): a free layout-preserving
    # sublane split because Vp % 8 == 0 (wrapper pads the point axis).
    p3 = p.reshape(tb, vp, u)                                        # (TB, Vp, U)
    agg = jnp.max(p3, axis=1).astype(o_ref.dtype)                    # (TB, U) per-voxel max

    # Lane-dense epilogue: o_ref's last dim is Vp*2U (>=128 lanes), so the output
    # block is dense in VMEM and the writeback DMA moves long contiguous rows.
    # Each point's [pointwise | aggregated] pair is assembled with one 2D
    # minor-dim concat and written with ONE static lane-slice store (the per-point
    # loop is static and small, so it fully unrolls).
    for v in range(vp):
        row = jnp.concatenate([p3[:, v, :].astype(o_ref.dtype), agg], axis=1)
        o_ref[:, v * 2 * u:(v + 1) * 2 * u] = row


# ---------------------------------------------------------------------------
# Chip-aware tiling helpers
# ---------------------------------------------------------------------------
def _num_tensorcores_per_chip():
    """Best effort: chips with 2 TensorCores (megacore: v7x / v5p / v4) -> 2."""
    try:
        kind = str(getattr(jax.devices()[0], "device_kind", "")).lower()
        if any(tag in kind for tag in ("v7", "v5p", "v4")):
            return 2
    except Exception:
        pass
    return 1


def _vmem_capacity_bytes():
    """Physical VMEM per TensorCore (128 MiB v5e/v6e, 64 MiB v7x); conservative fallback."""
    try:
        info = pltpu.get_tpu_info()
        cap = getattr(info, "vmem_capacity_bytes", None)
        if cap:
            return int(cap)
    except Exception:
        pass
    return 64 * 1024 * 1024


def _choose_block_voxels(num_voxels, padded_voxel_count, in_channels, units,
                         num_tc, vmem_budget_bytes):
    """Voxels per grid step.

    Biggest block that fits the VMEM budget.  On 2-TensorCore chips force an
    even, balanced step count so ('parallel',) megacore sharding keeps both
    cores busy; on single-TC v5e/v6e take one maximal block (extra grid steps
    are ~0.35us of pure overhead each).
    """
    def lane_pad(n):
        return -(-n // 128) * 128

    per_voxel = 4 * (
        2 * padded_voxel_count * lane_pad(in_channels)           # input block (double buffered)
        + 2 * lane_pad(padded_voxel_count * 2 * units)           # lane-dense output block (x2)
        + 3 * padded_voxel_count * lane_pad(2 * units))          # f32 intermediates
    budget_tb = max(1, vmem_budget_bytes // per_voxel)

    if num_tc >= 2 and num_voxels > 1:
        steps = num_tc
        while -(-num_voxels // steps) > budget_tb:
            steps += num_tc                                      # keep step count even
        tb = -(-num_voxels // steps)
    else:
        tb = min(budget_tb, num_voxels)

    if tb < num_voxels:
        # Output block's second-to-last dim must be a multiple of 8 unless it
        # spans the whole voxel axis.
        tb = min(num_voxels, max(8, -(-tb // 8) * 8))
    return tb


# ---------------------------------------------------------------------------
# Wrapper
# ---------------------------------------------------------------------------
def vfe_forward_pallas(inputs, w_fused, shift):
    """inputs: (B, V, Cin); w_fused: (Cin, U); shift: (1, U)  ->  (B, V, 2U)."""
    B, V, Cin = inputs.shape
    U = w_fused.shape[1]

    # Pad points-per-voxel to the sublane tile (8) by repeating point 0 of each
    # voxel: duplicates cannot change the per-voxel max, and their pointwise rows
    # are sliced off below.  Keeps the in-kernel reshape layout-free.
    Vp = -(-V // 8) * 8
    x = inputs
    if Vp != V:
        pad = jnp.broadcast_to(inputs[:, :1, :], (B, Vp - V, Cin))
        x = jnp.concatenate([inputs, pad], axis=1)

    num_tc = _num_tensorcores_per_chip()
    vmem_cap = _vmem_capacity_bytes()
    vmem_budget = min(32 * 1024 * 1024, vmem_cap // 3)    # ~32 MiB v5e/v6e, ~21 MiB v7x
    tb = _choose_block_voxels(B, Vp, Cin, U, num_tc, vmem_budget)
    grid = (pl.cdiv(B, tb),)

    x2d = x.reshape(B * Vp, Cin)       # free view: matmul M axis = (voxel, point)

    out_flat = pl.pallas_call(
        _vfe_kernel,
        out_shape=jax.ShapeDtypeStruct((B, Vp * 2 * U), inputs.dtype),
        grid_spec=pltpu.PrefetchScalarGridSpec(
            num_scalar_prefetch=0,
            grid=grid,
            in_specs=[
                pl.BlockSpec((tb * Vp, Cin), lambda i: (i, 0)),   # activations
                pl.BlockSpec((Cin, U), lambda i: (0, 0)),         # fused weight (resident)
                pl.BlockSpec((1, U), lambda i: (0, 0)),           # fused shift (resident)
            ],
            # TODO(synk): if an xprof trace shows exposed output writeback DMA, add
            # pipeline_mode=pl.Buffered(3) here (output block ~8x the input block).
            out_specs=pl.BlockSpec((tb, Vp * 2 * U), lambda i: (i, 0)),
        ),
        compiler_params=pltpu.CompilerParams(
            dimension_semantics=("parallel",),
            vmem_limit_bytes=min(2 * vmem_budget, vmem_cap - 8 * 1024 * 1024)),
    )(x2d, w_fused, shift)

    out = out_flat.reshape(B, Vp, 2 * U)        # free, contiguous reshape in HBM
    if Vp != V:
        out = out[:, :V, :]
    return out


# ---------------------------------------------------------------------------
# VFELayer in JAX
# ---------------------------------------------------------------------------
class VFELayerPallas:
    def __init__(self, in_channels, out_channels, use_norm=True, name="vfe",
                 *, key, eps=1e-3, hbm_dtype=jnp.float32):
        self.name = name
        self.use_norm = use_norm
        self.units = out_channels // 2
        self.eps = eps
        # bf16 HBM residency (~2x bandwidth for this memory-bound kernel) is
        # available via hbm_dtype=jnp.bfloat16; f32 default matches PyTorch numerics.
        self.hbm_dtype = hbm_dtype
        U, C = self.units, in_channels

        keys = jax.random.split(key, 6)
        bound = 1.0 / (C ** 0.5)
        # nn.Linear default init: uniform(-1/sqrt(C), 1/sqrt(C)).
        self.w = jax.random.uniform(keys[0], (U, C), jnp.float32, -bound, bound)

        if use_norm:
            # Inference-mode BatchNorm parameters / running statistics.
            self.gamma = 1.0 + 0.1 * jax.random.normal(keys[1], (U,), jnp.float32)
            self.beta = 0.1 * jax.random.normal(keys[2], (U,), jnp.float32)
            self.running_mean = 0.1 * jax.random.normal(keys[3], (U,), jnp.float32)
            self.running_var = jax.random.uniform(keys[4], (U,), jnp.float32, 0.5, 1.5)
            scale = self.gamma / jnp.sqrt(self.running_var + eps)
            shift = self.beta - self.running_mean * scale
            # Fold BN into the linear once (kernel computes x @ w_fused + shift).
            self.w_fused = (self.w.T * scale[None, :]).astype(hbm_dtype)
            self.shift = shift.reshape(1, U).astype(jnp.float32)
        else:
            self.bias = jax.random.uniform(keys[5], (U,), jnp.float32, -bound, bound)
            self.w_fused = self.w.T.astype(hbm_dtype)
            self.shift = self.bias.reshape(1, U).astype(jnp.float32)

    def __call__(self, inputs):
        # inputs: (num_voxels, voxel_count, in_channels)
        if inputs.dtype != self.hbm_dtype:
            inputs = inputs.astype(self.hbm_dtype)
        return vfe_forward_pallas(inputs, self.w_fused, self.shift)

    # Pure-JAX reference (no Pallas, unfused) for verification.
    def reference(self, inputs):
        x = jnp.einsum("bvc,uc->bvu", inputs.astype(jnp.float32), self.w)
        if self.use_norm:
            x = (x - self.running_mean) / jnp.sqrt(self.running_var + self.eps)
            x = x * self.gamma + self.beta
        else:
            x = x + self.bias
        pointwise = jnp.maximum(x, 0.0)
        aggregated = jnp.max(pointwise, axis=1, keepdims=True)
        repeated = jnp.broadcast_to(aggregated, pointwise.shape)
        return jnp.concatenate([pointwise, repeated], axis=2)


if __name__ == "__main__":
    key = jax.random.PRNGKey(0)
    k_param, k_x1, k_x2 = jax.random.split(key, 3)

    in_channels = 4
    out_channels = 32          # units = 16 -> output feature dim = 32
    layer = VFELayerPallas(in_channels, out_channels, use_norm=True, key=k_param)

    # Case 1: points-per-voxel already a multiple of 8 (no padding path).
    x1 = jax.random.normal(k_x1, (64, 8, in_channels), dtype=jnp.float32)
    out1 = layer(x1)
    jax.block_until_ready(out1)
    ref1 = layer.reference(x1)
    assert out1.shape == (64, 8, out_channels), out1.shape
    assert jnp.allclose(out1, ref1, atol=1e-3, rtol=1e-3), (
        float(jnp.max(jnp.abs(out1 - ref1))))

    # Case 2: ragged points-per-voxel (exercises the pad-to-8 wrapper path).
    x2 = jax.random.normal(k_x2, (16, 6, in_channels), dtype=jnp.float32)
    out2 = layer(x2)
    jax.block_until_ready(out2)
    ref2 = layer.reference(x2)
    assert out2.shape == (16, 6, out_channels), out2.shape
    assert jnp.allclose(out2, ref2, atol=1e-3, rtol=1e-3), (
        float(jnp.max(jnp.abs(out2 - ref2))))

    print("KERNEL_OK")
</pallas_src>

<mosaic_0001>
module attributes {stable_mosaic.version = 11 : i64} {
  func.func @_vfe_kernel(%arg0: i32, %arg1: memref<512x4xf32, #tpu.memory_space<vmem>>, %arg2: memref<4x16xf32, #tpu.memory_space<vmem>>, %arg3: memref<1x16xf32, #tpu.memory_space<vmem>>, %arg4: memref<64x256xf32, #tpu.memory_space<vmem>>) attributes {dimension_semantics = [#tpu.dimension_semantics<parallel>], iteration_bounds = array<i64: 1>, scalar_prefetch = 0 : i64, scratch_operands = 0 : i64, tpu.core_type = #tpu.core_type<tc>, window_params = [{transform_indices = @transform_0, window_bounds = array<i64: 512, 4>}, {pipeline_mode = #tpu.pipeline_mode<synchronous>, transform_indices = @transform_1, window_bounds = array<i64: 4, 16>}, {pipeline_mode = #tpu.pipeline_mode<synchronous>, transform_indices = @transform_2, window_bounds = array<i64: 1, 16>}, {transform_indices = @transform_3, window_bounds = array<i64: 64, 256>}]} {
    %c0 = arith.constant 0 : index
    %c0_0 = arith.constant 0 : index
    %0 = vector.load %arg1[%c0, %c0_0] : memref<512x4xf32, #tpu.memory_space<vmem>>, vector<512x4xf32>
    %c0_1 = arith.constant 0 : index
    %c0_2 = arith.constant 0 : index
    %1 = vector.load %arg2[%c0_1, %c0_2] : memref<4x16xf32, #tpu.memory_space<vmem>>, vector<4x16xf32>
    %cst = arith.constant dense<0.000000e+00> : vector<512x16xf32>
    %2 = tpu.matmul %0, %1, %cst {dimension_numbers = #tpu.dot_dimension_numbers<[1], [0], [0], [1], [0, 0, 1, 1], [], []>} : vector<512x4xf32>, vector<4x16xf32>, vector<512x16xf32> -> vector<512x16xf32>
    %c0_3 = arith.constant 0 : index
    %c0_4 = arith.constant 0 : index
    %3 = vector.load %arg3[%c0_3, %c0_4] : memref<1x16xf32, #tpu.memory_space<vmem>>, vector<1x16xf32>
    %4 = vector.broadcast %3 : vector<1x16xf32> to vector<512x16xf32>
    %5 = arith.addf %2, %4 : vector<512x16xf32>
    %cst_5 = arith.constant 0.000000e+00 : f32
    %6 = vector.broadcast %cst_5 : f32 to vector<512x16xf32>
    %7 = arith.maximumf %5, %6 : vector<512x16xf32>
    %8 = vector.shape_cast %7 : vector<512x16xf32> to vector<64x8x16xf32>
    %cst_6 = arith.constant dense<0xFF800000> : vector<64x16xf32>
    %9 = vector.multi_reduction <maximumf>, %8, %cst_6 [1] : vector<64x8x16xf32> to vector<64x16xf32>
    %10 = vector.extract_strided_slice %8 {offsets = [0, 0, 0], sizes = [64, 1, 16], strides = [1, 1, 1]} : vector<64x8x16xf32> to vector<64x1x16xf32>
    %11 = vector.shape_cast %10 : vector<64x1x16xf32> to vector<64x16xf32>
    %12 = tpu.concatenate %11, %9 in 1 : vector<64x16xf32>, vector<64x16xf32> -> vector<64x32xf32>
    %c0_7 = arith.constant 0 : index
    %c0_8 = arith.constant 0 : index
    %13 = vector.load %arg4[%c0_7, %c0_8] : memref<64x256xf32, #tpu.memory_space<vmem>>, vector<64x32xf32>
    tpu.vector_store %arg4[%c0_7, %c0_8], %12 {strides = array<i32>} : memref<64x256xf32, #tpu.memory_space<vmem>>, vector<64x32xf32>,
    %14 = vector.extract_strided_slice %8 {offsets = [0, 1, 0], sizes = [64, 1, 16], strides = [1, 1, 1]} : vector<64x8x16xf32> to vector<64x1x16xf32>
    %15 = vector.shape_cast %14 : vector<64x1x16xf32> to vector<64x16xf32>
    %16 = tpu.concatenate %15, %9 in 1 : vector<64x16xf32>, vector<64x16xf32> -> vector<64x32xf32>
    %c0_9 = arith.constant 0 : index
    %c32 = arith.constant 32 : index
    %17 = vector.load %arg4[%c0_9, %c32] : memref<64x256xf32, #tpu.memory_space<vmem>>, vector<64x32xf32>
    tpu.vector_store %arg4[%c0_9, %c32], %16 {strides = array<i32>} : memref<64x256xf32, #tpu.memory_space<vmem>>, vector<64x32xf32>,
    %18 = vector.extract_strided_slice %8 {offsets = [0, 2, 0], sizes = [64, 1, 16], strides = [1, 1, 1]} : vector<64x8x16xf32> to vector<64x1x16xf32>
    %19 = vector.shape_cast %18 : vector<64x1x16xf32> to vector<64x16xf32>
    %20 = tpu.concatenate %19, %9 in 1 : vector<64x16xf32>, vector<64x16xf32> -> vector<64x32xf32>
    %c0_10 = arith.constant 0 : index
    %c64 = arith.constant 64 : index
    %21 = vector.load %arg4[%c0_10, %c64] : memref<64x256xf32, #tpu.memory_space<vmem>>, vector<64x32xf32>
    tpu.vector_store %arg4[%c0_10, %c64], %20 {strides = array<i32>} : memref<64x256xf32, #tpu.memory_space<vmem>>, vector<64x32xf32>,
    %22 = vector.extract_strided_slice %8 {offsets = [0, 3, 0], sizes = [64, 1, 16], strides = [1, 1, 1]} : vector<64x8x16xf32> to vector<64x1x16xf32>
    %23 = vector.shape_cast %22 : vector<64x1x16xf32> to vector<64x16xf32>
    %24 = tpu.concatenate %23, %9 in 1 : vector<64x16xf32>, vector<64x16xf32> -> vector<64x32xf32>
    %c0_11 = arith.constant 0 : index
    %c96 = arith.constant 96 : index
    %25 = vector.load %arg4[%c0_11, %c96] : memref<64x256xf32, #tpu.memory_space<vmem>>, vector<64x32xf32>
    tpu.vector_store %arg4[%c0_11, %c96], %24 {strides = array<i32>} : memref<64x256xf32, #tpu.memory_space<vmem>>, vector<64x32xf32>,
    %26 = vector.extract_strided_slice %8 {offsets = [0, 4, 0], sizes = [64, 1, 16], strides = [1, 1, 1]} : vector<64x8x16xf32> to vector<64x1x16xf32>
    %27 = vector.shape_cast %26 : vector<64x1x16xf32> to vector<64x16xf32>
    %28 = tpu.concatenate %27, %9 in 1 : vector<64x16xf32>, vector<64x16xf32> -> vector<64x32xf32>
    %c0_12 = arith.constant 0 : index
    %c128 = arith.constant 128 : index
    %29 = vector.load %arg4[%c0_12, %c128] : memref<64x256xf32, #tpu.memory_space<vmem>>, vector<64x32xf32>
    tpu.vector_store %arg4[%c0_12, %c128], %28 {strides = array<i32>} : memref<64x256xf32, #tpu.memory_space<vmem>>, vector<64x32xf32>,
    %30 = vector.extract_strided_slice %8 {offsets = [0, 5, 0], sizes = [64, 1, 16], strides = [1, 1, 1]} : vector<64x8x16xf32> to vector<64x1x16xf32>
    %31 = vector.shape_cast %30 : vector<64x1x16xf32> to vector<64x16xf32>
    %32 = tpu.concatenate %31, %9 in 1 : vector<64x16xf32>, vector<64x16xf32> -> vector<64x32xf32>
    %c0_13 = arith.constant 0 : index
    %c160 = arith.constant 160 : index
    %33 = vector.load %arg4[%c0_13, %c160] : memref<64x256xf32, #tpu.memory_space<vmem>>, vector<64x32xf32>
    tpu.vector_store %arg4[%c0_13, %c160], %32 {strides = array<i32>} : memref<64x256xf32, #tpu.memory_space<vmem>>, vector<64x32xf32>,
    %34 = vector.extract_strided_slice %8 {offsets = [0, 6, 0], sizes = [64, 1, 16], strides = [1, 1, 1]} : vector<64x8x16xf32> to vector<64x1x16xf32>
    %35 = vector.shape_cast %34 : vector<64x1x16xf32> to vector<64x16xf32>
    %36 = tpu.concatenate %35, %9 in 1 : vector<64x16xf32>, vector<64x16xf32> -> vector<64x32xf32>
    %c0_14 = arith.constant 0 : index
    %c192 = arith.constant 192 : index
    %37 = vector.load %arg4[%c0_14, %c192] : memref<64x256xf32, #tpu.memory_space<vmem>>, vector<64x32xf32>
    tpu.vector_store %arg4[%c0_14, %c192], %36 {strides = array<i32>} : memref<64x256xf32, #tpu.memory_space<vmem>>, vector<64x32xf32>,
    %38 = vector.extract_strided_slice %8 {offsets = [0, 7, 0], sizes = [64, 1, 16], strides = [1, 1, 1]} : vector<64x8x16xf32> to vector<64x1x16xf32>
    %39 = vector.shape_cast %38 : vector<64x1x16xf32> to vector<64x16xf32>
    %40 = tpu.concatenate %39, %9 in 1 : vector<64x16xf32>, vector<64x16xf32> -> vector<64x32xf32>
    %c0_15 = arith.constant 0 : index
    %c224 = arith.constant 224 : index
    %41 = vector.load %arg4[%c0_15, %c224] : memref<64x256xf32, #tpu.memory_space<vmem>>, vector<64x32xf32>
    tpu.vector_store %arg4[%c0_15, %c224], %40 {strides = array<i32>} : memref<64x256xf32, #tpu.memory_space<vmem>>, vector<64x32xf32>,
    return
  }
  func.func @transform_0(%arg0: i32) -> (i32, i32) {
    %c0_i32 = arith.constant 0 : i32
    %c0_i32_0 = arith.constant 0 : i32
    return %arg0, %c0_i32 : i32, i32
  }
  func.func @transform_1(%arg0: i32) -> (i32, i32) {
    %c0_i32 = arith.constant 0 : i32
    %c0_i32_0 = arith.constant 0 : i32
    %c0_i32_1 = arith.constant 0 : i32
    return %c0_i32, %c0_i32_0 : i32, i32
  }
  func.func @transform_2(%arg0: i32) -> (i32, i32) {
    %c0_i32 = arith.constant 0 : i32
    %c0_i32_0 = arith.constant 0 : i32
    %c0_i32_1 = arith.constant 0 : i32
    return %c0_i32, %c0_i32_0 : i32, i32
  }
  func.func @transform_3(%arg0: i32) -> (i32, i32) {
    %c0_i32 = arith.constant 0 : i32
    %c0_i32_0 = arith.constant 0 : i32
    return %arg0, %c0_i32 : i32, i32
  }
}

</mosaic_0001>

<llo_original>
// kernel: tpu_custom_call.1
$region0: #{tpu_custom_call.1}
  #allocation0 [shape = 'u32[]', space=smem, size = 0x4, offset = 0x4, fixed_abs, tag = 'smem constant byte address 0x4 - core index']
  #allocation1 [shape = 'u32[144,128]{1,0:T(1,128)}', space=vmem, size = 0x12000, scoped, tag = 'internal scratch']
  %s0 = inlined_call_operand.vmem [shape: f32[512,4], index: 0, kind: input, shape index: {}]
  %s1 = inlined_call_operand.vmem [shape: f32[4,16], index: 1, kind: input, shape index: {}]
  %s2 = inlined_call_operand.vmem [shape: f32[1,16], index: 2, kind: input, shape index: {}]
  %s3 = inlined_call_operand.hbm [shape: f32[64,256], index: 3, kind: output, shape index: {}]
  %s4 = sld [smem:[#allocation0]]
  $region22: #{tpu_custom_call.1} parent=0
    _
  %s6 = ssub.s32 1, %s4
  %s7 = scalar_select 0, %s6, %s4
  $region1: #{tpu_custom_call.1} parent=0
    #allocation2 [shape = 'u8[65536]{0}', space=vmem, size = 0x10000, scoped, tag = 'output window, operand 0, single buffered']
    #allocation3 [shape = 's32[1]{0}', space=sflag, size = 0x4, scoped, tag = 'scoped memory for tpu_custom_call.1']
    %8 = vsyncpa [#allocation3], 0
    // Predicated region
    $region2: #{tpu_custom_call.1} parent=1 // pred_check
      _
    $region3: #{tpu_custom_call.1} parent=1 // pred_check_branch
      %10 = sbr.rel (0) target = $region5
    $region4: #{tpu_custom_call.1} parent=1 // pred_region
      _
    $region5: #{tpu_custom_call.1} parent=1 // pred_fallthru
      _
    // Predicated region
    $region6: #{tpu_custom_call.1} parent=1 // pred_check
      _
    $region7: #{tpu_custom_call.1} parent=1 // pred_check_branch
      %12 = sbr.rel (0) target = $region9
    $region8: #{tpu_custom_call.1} parent=1 // pred_region
      _
    $region9: #{tpu_custom_call.1} parent=1 // pred_fallthru
      _
    // Predicated region
    $region10: #{tpu_custom_call.1} parent=1 // pred_check
      _
    $region11: #{tpu_custom_call.1} parent=1 // pred_check_branch
      %14 = sbr.rel (0) target = $region13
    $region12: #{tpu_custom_call.1} parent=1 // pred_region
      _
    $region13: #{tpu_custom_call.1} parent=1 // pred_fallthru
      _
    %v15 = vld [vmem:[%s0] sm:$0xff]
    %v16 = vld [vmem:[%s0 + $0x8] sm:$0xff]
    %v17 = vld [vmem:[%s0 + $0x10] sm:$0xff]
    %v18 = vld [vmem:[%s0 + $0x18] sm:$0xff]
    %v19 = vld [vmem:[%s0 + $0x20] sm:$0xff]
    %v20 = vld [vmem:[%s0 + $0x28] sm:$0xff]
    %v21 = vld [vmem:[%s0 + $0x30] sm:$0xff]
    %v22 = vld [vmem:[%s0 + $0x38] sm:$0xff]
    %v23 = vld [vmem:[%s0 + $0x40] sm:$0xff]
    %v24 = vld [vmem:[%s0 + $0x48] sm:$0xff]
    %v25 = vld [vmem:[%s0 + $0x50] sm:$0xff]
    %v26 = vld [vmem:[%s0 + $0x58] sm:$0xff]
    %v27 = vld [vmem:[%s0 + $0x60] sm:$0xff]
    %v28 = vld [vmem:[%s0 + $0x68] sm:$0xff]
    %v29 = vld [vmem:[%s0 + $0x70] sm:$0xff]
    %v30 = vld [vmem:[%s0 + $0x78] sm:$0xff]
    %v31 = vld [vmem:[%s0 + $0x80] sm:$0xff]
    %v32 = vld [vmem:[%s0 + $0x88] sm:$0xff]
    %v33 = vld [vmem:[%s0 + $0x90] sm:$0xff]
    %v34 = vld [vmem:[%s0 + $0x98] sm:$0xff]
    %v35 = vld [vmem:[%s0 + $0xa0] sm:$0xff]
    %v36 = vld [vmem:[%s0 + $0xa8] sm:$0xff]
    %v37 = vld [vmem:[%s0 + $0xb0] sm:$0xff]
    %v38 = vld [vmem:[%s0 + $0xb8] sm:$0xff]
    %v39 = vld [vmem:[%s0 + $0xc0] sm:$0xff]
    %v40 = vld [vmem:[%s0 + $0xc8] sm:$0xff]
    %v41 = vld [vmem:[%s0 + $0xd0] sm:$0xff]
    %v42 = vld [vmem:[%s0 + $0xd8] sm:$0xff]
    %v43 = vld [vmem:[%s0 + $0xe0] sm:$0xff]
    %v44 = vld [vmem:[%s0 + $0xe8] sm:$0xff]
    %v45 = vld [vmem:[%s0 + $0xf0] sm:$0xff]
    %v46 = vld [vmem:[%s0 + $0xf8] sm:$0xff]
    %v47 = vld [vmem:[%s0 + $0x100] sm:$0xff]
    %v48 = vld [vmem:[%s0 + $0x108] sm:$0xff]
    %v49 = vld [vmem:[%s0 + $0x110] sm:$0xff]
    %v50 = vld [vmem:[%s0 + $0x118] sm:$0xff]
    %v51 = vld [vmem:[%s0 + $0x120] sm:$0xff]
    %v52 = vld [vmem:[%s0 + $0x128] sm:$0xff]
    %v53 = vld [vmem:[%s0 + $0x130] sm:$0xff]
    %v54 = vld [vmem:[%s0 + $0x138] sm:$0xff]
    %v55 = vld [vmem:[%s0 + $0x140] sm:$0xff]
    %v56 = vld [vmem:[%s0 + $0x148] sm:$0xff]
    %v57 = vld [vmem:[%s0 + $0x150] sm:$0xff]
    %v58 = vld [vmem:[%s0 + $0x158] sm:$0xff]
    %v59 = vld [vmem:[%s0 + $0x160] sm:$0xff]
    %v60 = vld [vmem:[%s0 + $0x168] sm:$0xff]
    %v61 = vld [vmem:[%s0 + $0x170] sm:$0xff]
    %v62 = vld [vmem:[%s0 + $0x178] sm:$0xff]
    %v63 = vld [vmem:[%s0 + $0x180] sm:$0xff]
    %v64 = vld [vmem:[%s0 + $0x188] sm:$0xff]
    %v65 = vld [vmem:[%s0 + $0x190] sm:$0xff]
    %v66 = vld [vmem:[%s0 + $0x198] sm:$0xff]
    %v67 = vld [vmem:[%s0 + $0x1a0] sm:$0xff]
    %v68 = vld [vmem:[%s0 + $0x1a8] sm:$0xff]
    %v69 = vld [vmem:[%s0 + $0x1b0] sm:$0xff]
    %v70 = vld [vmem:[%s0 + $0x1b8] sm:$0xff]
    %v71 = vld [vmem:[%s0 + $0x1c0] sm:$0xff]
    %v72 = vld [vmem:[%s0 + $0x1c8] sm:$0xff]
    %v73 = vld [vmem:[%s0 + $0x1d0] sm:$0xff]
    %v74 = vld [vmem:[%s0 + $0x1d8] sm:$0xff]
    %v75 = vld [vmem:[%s0 + $0x1e0] sm:$0xff]
    %v76 = vld [vmem:[%s0 + $0x1e8] sm:$0xff]
    %v77 = vld [vmem:[%s0 + $0x1f0] sm:$0xff]
    %v78 = vld [vmem:[%s0 + $0x1f8] sm:$0xff]
    %v79 = vld [vmem:[%s1] sm:$0xf]
    %v80 = vld [vmem:[%s2] sm:$0x1]
    %v82 = vlaneseq
    %v83 = vshrl.u32 %v82, 7
    %v84 = vsub.s32 0, %v83
    %v85 = vrot.slane %v80, %v84
    %vm87 = vcmask 31744
    %v89 = vsel %vm87, %v15, 0
    %v92 = vsel %vm87, %v16, 0
    %v95 = vsel %vm87, %v17, 0
    %v98 = vsel %vm87, %v18, 0
    %v101 = vsel %vm87, %v19, 0
    %v104 = vsel %vm87, %v20, 0
    %v107 = vsel %vm87, %v21, 0
    %v110 = vsel %vm87, %v22, 0
    %v113 = vsel %vm87, %v23, 0
    %v116 = vsel %vm87, %v24, 0
    %v119 = vsel %vm87, %v25, 0
    %v122 = vsel %vm87, %v26, 0
    %v125 = vsel %vm87, %v27, 0
    %v128 = vsel %vm87, %v28, 0
    %v131 = vsel %vm87, %v29, 0
    %v134 = vsel %vm87, %v30, 0
    %v137 = vsel %vm87, %v31, 0
    %v140 = vsel %vm87, %v32, 0
    %v143 = vsel %vm87, %v33, 0
    %v146 = vsel %vm87, %v34, 0
    %v149 = vsel %vm87, %v35, 0
    %v152 = vsel %vm87, %v36, 0
    %v155 = vsel %vm87, %v37, 0
    %v158 = vsel %vm87, %v38, 0
    %v161 = vsel %vm87, %v39, 0
    %v164 = vsel %vm87, %v40, 0
    %v167 = vsel %vm87, %v41, 0
    %v170 = vsel %vm87, %v42, 0
    %v173 = vsel %vm87, %v43, 0
    %v176 = vsel %vm87, %v44, 0
    %v179 = vsel %vm87, %v45, 0
    %v182 = vsel %vm87, %v46, 0
    %v185 = vsel %vm87, %v47, 0
    %v188 = vsel %vm87, %v48, 0
    %v191 = vsel %vm87, %v49, 0
    %v194 = vsel %vm87, %v50, 0
    %v197 = vsel %vm87, %v51, 0
    %v200 = vsel %vm87, %v52, 0
    %v203 = vsel %vm87, %v53, 0
    %v206 = vsel %vm87, %v54, 0
    %v209 = vsel %vm87, %v55, 0
    %v212 = vsel %vm87, %v56, 0
    %v215 = vsel %vm87, %v57, 0
    %v218 = vsel %vm87, %v58, 0
    %v221 = vsel %vm87, %v59, 0
    %v224 = vsel %vm87, %v60, 0
    %v227 = vsel %vm87, %v61, 0
    %v230 = vsel %vm87, %v62, 0
    %v233 = vsel %vm87, %v63, 0
    %v236 = vsel %vm87, %v64, 0
    %v239 = vsel %vm87, %v65, 0
    %v242 = vsel %vm87, %v66, 0
    %v245 = vsel %vm87, %v67, 0
    %v248 = vsel %vm87, %v68, 0
    %v251 = vsel %vm87, %v69, 0
    %v254 = vsel %vm87, %v70, 0
    %v257 = vsel %vm87, %v71, 0
    %v260 = vsel %vm87, %v72, 0
    %v263 = vsel %vm87, %v73, 0
    %v266 = vsel %vm87, %v74, 0
    %v269 = vsel %vm87, %v75, 0
    %v272 = vsel %vm87, %v76, 0
    %v275 = vsel %vm87, %v77, 0
    %v278 = vsel %vm87, %v78, 0
    %vm280 = vcmask 1043456
    %v282 = vsel %vm280, %v79, 0
    %284 = vmatprep.subr.mxu0 0.0
    %285 = vmatpush1.msra.mxu0 %v282
    %286 = vmatprep.subr.mxu0 0.0
    %287 = vmatpush1.msra.mxu0 0.0
    %288 = vmatprep.subr.mxu0 0.0
    %289 = vmatpush1.msra.mxu0 0.0
    %290 = vmatprep.subr.mxu0 0.0
    %291 = vmatpush1.msra.mxu0 0.0
    %292 = vmatprep.subr.mxu0 0.0
    %293 = vmatpush1.msra.mxu0 0.0
    %294 = vmatprep.subr.mxu0 0.0
    %295 = vmatpush1.msra.mxu0 0.0
    %296 = vmatprep.subr.mxu0 0.0
    %297 = vmatpush1.msra.mxu0 0.0
    %298 = vmatprep.subr.mxu0 0.0
    %299 = vmatpush1.msra.mxu0 0.0
    %300 = vmatprep.subr.mxu0 0.0
    %301 = vmatpush1.msra.mxu0 0.0
    %302 = vmatprep.subr.mxu0 0.0
    %303 = vmatpush1.msra.mxu0 0.0
    %304 = vmatprep.subr.mxu0 0.0
    %305 = vmatpush1.msra.mxu0 0.0
    %306 = vmatprep.subr.mxu0 0.0
    %307 = vmatpush1.msra.mxu0 0.0
    %308 = vmatprep.subr.mxu0 0.0
    %309 = vmatpush1.msra.mxu0 0.0
    %310 = vmatprep.subr.mxu0 0.0
    %311 = vmatpush1.msra.mxu0 0.0
    %312 = vmatprep.subr.mxu0 0.0
    %313 = vmatpush1.msra.mxu0 0.0
    %314 = vmatprep.subr.mxu0 0.0
    %315 = vmatpush1.msra.mxu0 0.0
    %316 = vmatprep.subr.mxu0 0.0
    %317 = vmatpush1.msra.mxu0 0.0
    %318 = vmatprep.subr.mxu0 0.0
    %319 = vmatpush1.msra.mxu0 0.0
    %320 = vmatprep.subr.mxu0 0.0
    %321 = vmatpush1.msra.mxu0 0.0
    %322 = vmatprep.subr.mxu0 0.0
    %323 = vmatpush1.msra.mxu0 0.0
    %324 = vmatprep.subr.mxu0 0.0
    %325 = vmatpush1.msra.mxu0 0.0
    %326 = vmatprep.subr.mxu0 0.0
    %327 = vmatpush1.msra.mxu0 0.0
    %328 = vmatprep.subr.mxu0 0.0
    %329 = vmatpush1.msra.mxu0 0.0
    %330 = vmatprep.subr.mxu0 0.0
    %331 = vmatpush1.msra.mxu0 0.0
    %332 = vmatprep.subr.mxu0 0.0
    %333 = vmatpush1.msra.mxu0 0.0
    %334 = vmatprep.subr.mxu0 0.0
    %335 = vmatpush1.msra.mxu0 0.0
    %336 = vmatprep.subr.mxu0 0.0
    %337 = vmatpush1.msra.mxu0 0.0
    %338 = vmatprep.subr.mxu0 0.0
    %339 = vmatpush1.msra.mxu0 0.0
    %340 = vmatprep.subr.mxu0 0.0
    %341 = vmatpush1.msra.mxu0 0.0
    %342 = vmatprep.subr.mxu0 0.0
    %343 = vmatpush1.msra.mxu0 0.0
    %344 = vmatprep.subr.mxu0 0.0
    %345 = vmatpush1.msra.mxu0 0.0
    %346 = vmatprep.subr.mxu0 0.0
    %347 = vmatpush1.msra.mxu0 0.0
    %348 = vmatprep.mubr.f32.mxu0 0.0
    %349 = vmatmul.mubr.f32.gmra.mrb[0].mxu0 %v89
    %v350 = vpop.f32.mrb[0].mxu0
    %v351 = vadd.f32 %v85, %v350
    %v352 = vpop.f32.mrb[0].mxu0
    %353 = vmatprep.mubr.f32.mxu0 0.0
    %354 = vmatmul.mubr.f32.gmra.mrb[0].mxu0 %v92
    %v355 = vpop.f32.mrb[0].mxu0
    %v356 = vadd.f32 %v85, %v355
    %v357 = vpop.f32.mrb[0].mxu0
    %358 = vmatprep.mubr.f32.mxu0 0.0
    %359 = vmatmul.mubr.f32.gmra.mrb[0].mxu0 %v95
    %v360 = vpop.f32.mrb[0].mxu0
    %v361 = vadd.f32 %v85, %v360
    %v362 = vpop.f32.mrb[0].mxu0
    %363 = vmatprep.mubr.f32.mxu0 0.0
    %364 = vmatmul.mubr.f32.gmra.mrb[0].mxu0 %v98
    %v365 = vpop.f32.mrb[0].mxu0
    %v366 = vadd.f32 %v85, %v365
    %v367 = vpop.f32.mrb[0].mxu0
    %368 = vmatprep.mubr.f32.mxu0 0.0
    %369 = vmatmul.mubr.f32.gmra.mrb[0].mxu0 %v101
    %v370 = vpop.f32.mrb[0].mxu0
    %v371 = vadd.f32 %v85, %v370
    %v372 = vpop.f32.mrb[0].mxu0
    %373 = vmatprep.mubr.f32.mxu0 0.0
    %374 = vmatmul.mubr.f32.gmra.mrb[0].mxu0 %v104
    %v375 = vpop.f32.mrb[0].mxu0
    %v376 = vadd.f32 %v85, %v375
    %v377 = vpop.f32.mrb[0].mxu0
    %378 = vmatprep.mubr.f32.mxu0 0.0
    %379 = vmatmul.mubr.f32.gmra.mrb[0].mxu0 %v107
    %v380 = vpop.f32.mrb[0].mxu0
    %v381 = vadd.f32 %v85, %v380
    %v382 = vpop.f32.mrb[0].mxu0
    %383 = vmatprep.mubr.f32.mxu0 0.0
    %384 = vmatmul.mubr.f32.gmra.mrb[0].mxu0 %v110
    %v385 = vpop.f32.mrb[0].mxu0
    %v386 = vadd.f32 %v85, %v385
    %v387 = vpop.f32.mrb[0].mxu0
    %388 = vmatprep.mubr.f32.mxu0 0.0
    %389 = vmatmul.mubr.f32.gmra.mrb[0].mxu0 %v113
    %v390 = vpop.f32.mrb[0].mxu0
    %v391 = vadd.f32 %v85, %v390
    %v392 = vpop.f32.mrb[0].mxu0
    %393 = vmatprep.mubr.f32.mxu0 0.0
    %394 = vmatmul.mubr.f32.gmra.mrb[0].mxu0 %v116
    %v395 = vpop.f32.mrb[0].mxu0
    %v396 = vadd.f32 %v85, %v395
    %v397 = vpop.f32.mrb[0].mxu0
    %398 = vmatprep.mubr.f32.mxu0 0.0
    %399 = vmatmul.mubr.f32.gmra.mrb[0].mxu0 %v119
    %v400 = vpop.f32.mrb[0].mxu0
    %v401 = vadd.f32 %v85, %v400
    %v402 = vpop.f32.mrb[0].mxu0
    %403 = vmatprep.mubr.f32.mxu0 0.0
    %404 = vmatmul.mubr.f32.gmra.mrb[0].mxu0 %v122
    %v405 = vpop.f32.mrb[0].mxu0
    %v406 = vadd.f32 %v85, %v405
    %v407 = vpop.f32.mrb[0].mxu0
    %408 = vmatprep.mubr.f32.mxu0 0.0
    %409 = vmatmul.mubr.f32.gmra.mrb[0].mxu0 %v125
    %v410 = vpop.f32.mrb[0].mxu0
    %v411 = vadd.f32 %v85, %v410
    %v412 = vpop.f32.mrb[0].mxu0
    %413 = vmatprep.mubr.f32.mxu0 0.0
    %414 = vmatmul.mubr.f32.gmra.mrb[0].mxu0 %v128
    %v415 = vpop.f32.mrb[0].mxu0
    %v416 = vadd.f32 %v85, %v415
    %v417 = vpop.f32.mrb[0].mxu0
    %418 = vmatprep.mubr.f32.mxu0 0.0
    %419 = vmatmul.mubr.f32.gmra.mrb[0].mxu0 %v131
    %v420 = vpop.f32.mrb[0].mxu0
    %v421 = vadd.f32 %v85, %v420
    %v422 = vpop.f32.mrb[0].mxu0
    %423 = vmatprep.mubr.f32.mxu0 0.0
    %424 = vmatmul.mubr.f32.gmra.mrb[0].mxu0 %v134
    %v425 = vpop.f32.mrb[0].mxu0
    %v426 = vadd.f32 %v85, %v425
    %v427 = vpop.f32.mrb[0].mxu0
    %428 = vmatprep.mubr.f32.mxu0 0.0
    %429 = vmatmul.mubr.f32.gmra.mrb[0].mxu0 %v137
    %v430 = vpop.f32.mrb[0].mxu0
    %v431 = vadd.f32 %v85, %v430
    %v432 = vpop.f32.mrb[0].mxu0
    %433 = vmatprep.mubr.f32.mxu0 0.0
    %434 = vmatmul.mubr.f32.gmra.mrb[0].mxu0 %v140
    %v435 = vpop.f32.mrb[0].mxu0
    %v436 = vadd.f32 %v85, %v435
    %v437 = vpop.f32.mrb[0].mxu0
    %438 = vmatprep.mubr.f32.mxu0 0.0
    %439 = vmatmul.mubr.f32.gmra.mrb[0].mxu0 %v143
    %v440 = vpop.f32.mrb[0].mxu0
    %v441 = vadd.f32 %v85, %v440
    %v442 = vpop.f32.mrb[0].mxu0
    %443 = vmatprep.mubr.f32.mxu0 0.0
    %444 = vmatmul.mubr.f32.gmra.mrb[0].mxu0 %v146
    %v445 = vpop.f32.mrb[0].mxu0
    %v446 = vadd.f32 %v85, %v445
    %v447 = vpop.f32.mrb[0].mxu0
    %448 = vmatprep.mubr.f32.mxu0 0.0
    %449 = vmatmul.mubr.f32.gmra.mrb[0].mxu0 %v149
    %v450 = vpop.f32.mrb[0].mxu0
    %v451 = vadd.f32 %v85, %v450
    %v452 = vpop.f32.mrb[0].mxu0
    %453 = vmatprep.mubr.f32.mxu0 0.0
    %454 = vmatmul.mubr.f32.gmra.mrb[0].mxu0 %v152
    %v455 = vpop.f32.mrb[0].mxu0
    %v456 = vadd.f32 %v85, %v455
    %v457 = vpop.f32.mrb[0].mxu0
    %458 = vmatprep.mubr.f32.mxu0 0.0
    %459 = vmatmul.mubr.f32.gmra.mrb[0].mxu0 %v155
    %v460 = vpop.f32.mrb[0].mxu0
    %v461 = vadd.f32 %v85, %v460
    %v462 = vpop.f32.mrb[0].mxu0
    %463 = vmatprep.mubr.f32.mxu0 0.0
    %464 = vmatmul.mubr.f32.gmra.mrb[0].mxu0 %v158
    %v465 = vpop.f32.mrb[0].mxu0
    %v466 = vadd.f32 %v85, %v465
    %v467 = vpop.f32.mrb[0].mxu0
    %468 = vmatprep.mubr.f32.mxu0 0.0
    %469 = vmatmul.mubr.f32.gmra.mrb[0].mxu0 %v161
    %v470 = vpop.f32.mrb[0].mxu0
    %v471 = vadd.f32 %v85, %v470
    %v472 = vpop.f32.mrb[0].mxu0
    %473 = vmatprep.mubr.f32.mxu0 0.0
    %474 = vmatmul.mubr.f32.gmra.mrb[0].mxu0 %v164
    %v475 = vpop.f32.mrb[0].mxu0
    %v476 = vadd.f32 %v85, %v475
    %v477 = vpop.f32.mrb[0].mxu0
    %478 = vmatprep.mubr.f32.mxu0 0.0
    %479 = vmatmul.mubr.f32.gmra.mrb[0].mxu0 %v167
    %v480 = vpop.f32.mrb[0].mxu0
    %v481 = vadd.f32 %v85, %v480
    %v482 = vpop.f32.mrb[0].mxu0
    %483 = vmatprep.mubr.f32.mxu0 0.0
    %484 = vmatmul.mubr.f32.gmra.mrb[0].mxu0 %v170
    %v485 = vpop.f32.mrb[0].mxu0
    %v486 = vadd.f32 %v85, %v485
    %v487 = vpop.f32.mrb[0].mxu0
    %488 = vmatprep.mubr.f32.mxu0 0.0
    %489 = vmatmul.mubr.f32.gmra.mrb[0].mxu0 %v173
    %v490 = vpop.f32.mrb[0].mxu0
    %v491 = vadd.f32 %v85, %v490
    %v492 = vpop.f32.mrb[0].mxu0
    %493 = vmatprep.mubr.f32.mxu0 0.0
    %494 = vmatmul.mubr.f32.gmra.mrb[0].mxu0 %v176
    %v495 = vpop.f32.mrb[0].mxu0
    %v496 = vadd.f32 %v85, %v495
    %v497 = vpop.f32.mrb[0].mxu0
    %498 = vmatprep.mubr.f32.mxu0 0.0
    %499 = vmatmul.mubr.f32.gmra.mrb[0].mxu0 %v179
    %v500 = vpop.f32.mrb[0].mxu0
    %v501 = vadd.f32 %v85, %v500
    %v502 = vpop.f32.mrb[0].mxu0
    %503 = vmatprep.mubr.f32.mxu0 0.0
    %504 = vmatmul.mubr.f32.gmra.mrb[0].mxu0 %v182
    %v505 = vpop.f32.mrb[0].mxu0
    %v506 = vadd.f32 %v85, %v505
    %v507 = vpop.f32.mrb[0].mxu0
    %508 = vmatprep.mubr.f32.mxu0 0.0
    %509 = vmatmul.mubr.f32.gmra.mrb[0].mxu0 %v185
    %v510 = vpop.f32.mrb[0].mxu0
    %v511 = vadd.f32 %v85, %v510
    %v512 = vpop.f32.mrb[0].mxu0
    %513 = vmatprep.mubr.f32.mxu0 0.0
    %514 = vmatmul.mubr.f32.gmra.mrb[0].mxu0 %v188
    %v515 = vpop.f32.mrb[0].mxu0
    %v516 = vadd.f32 %v85, %v515
    %v517 = vpop.f32.mrb[0].mxu0
    %518 = vmatprep.mubr.f32.mxu0 0.0
    %519 = vmatmul.mubr.f32.gmra.mrb[0].mxu0 %v191
    %v520 = vpop.f32.mrb[0].mxu0
    %v521 = vadd.f32 %v85, %v520
    %v522 = vpop.f32.mrb[0].mxu0
    %523 = vmatprep.mubr.f32.mxu0 0.0
    %524 = vmatmul.mubr.f32.gmra.mrb[0].mxu0 %v194
    %v525 = vpop.f32.mrb[0].mxu0
    %v526 = vadd.f32 %v85, %v525
    %v527 = vpop.f32.mrb[0].mxu0
    %528 = vmatprep.mubr.f32.mxu0 0.0
    %529 = vmatmul.mubr.f32.gmra.mrb[0].mxu0 %v197
    %v530 = vpop.f32.mrb[0].mxu0
    %v531 = vadd.f32 %v85, %v530
    %v532 = vpop.f32.mrb[0].mxu0
    %533 = vmatprep.mubr.f32.mxu0 0.0
    %534 = vmatmul.mubr.f32.gmra.mrb[0].mxu0 %v200
    %v535 = vpop.f32.mrb[0].mxu0
    %v536 = vadd.f32 %v85, %v535
    %v537 = vpop.f32.mrb[0].mxu0
    %538 = vmatprep.mubr.f32.mxu0 0.0
    %539 = vmatmul.mubr.f32.gmra.mrb[0].mxu0 %v203
    %v540 = vpop.f32.mrb[0].mxu0
    %v541 = vadd.f32 %v85, %v540
    %v542 = vpop.f32.mrb[0].mxu0
    %543 = vmatprep.mubr.f32.mxu0 0.0
    %544 = vmatmul.mubr.f32.gmra.mrb[0].mxu0 %v206
    %v545 = vpop.f32.mrb[0].mxu0
    %v546 = vadd.f32 %v85, %v545
    %v547 = vpop.f32.mrb[0].mxu0
    %548 = vmatprep.mubr.f32.mxu0 0.0
    %549 = vmatmul.mubr.f32.gmra.mrb[0].mxu0 %v209
    %v550 = vpop.f32.mrb[0].mxu0
    %v551 = vadd.f32 %v85, %v550
    %v552 = vpop.f32.mrb[0].mxu0
    %553 = vmatprep.mubr.f32.mxu0 0.0
    %554 = vmatmul.mubr.f32.gmra.mrb[0].mxu0 %v212
    %v555 = vpop.f32.mrb[0].mxu0
    %v556 = vadd.f32 %v85, %v555
    %v557 = vpop.f32.mrb[0].mxu0
    %558 = vmatprep.mubr.f32.mxu0 0.0
    %559 = vmatmul.mubr.f32.gmra.mrb[0].mxu0 %v215
    %v560 = vpop.f32.mrb[0].mxu0
    %v561 = vadd.f32 %v85, %v560
    %v562 = vpop.f32.mrb[0].mxu0
    %563 = vmatprep.mubr.f32.mxu0 0.0
    %564 = vmatmul.mubr.f32.gmra.mrb[0].mxu0 %v218
    %v565 = vpop.f32.mrb[0].mxu0
    %v566 = vadd.f32 %v85, %v565
    %v567 = vpop.f32.mrb[0].mxu0
    %568 = vmatprep.mubr.f32.mxu0 0.0
    %569 = vmatmul.mubr.f32.gmra.mrb[0].mxu0 %v221
    %v570 = vpop.f32.mrb[0].mxu0
    %v571 = vadd.f32 %v85, %v570
    %v572 = vpop.f32.mrb[0].mxu0
    %573 = vmatprep.mubr.f32.mxu0 0.0
    %574 = vmatmul.mubr.f32.gmra.mrb[0].mxu0 %v224
    %v575 = vpop.f32.mrb[0].mxu0
    %v576 = vadd.f32 %v85, %v575
    %v577 = vpop.f32.mrb[0].mxu0
    %578 = vmatprep.mubr.f32.mxu0 0.0
    %579 = vmatmul.mubr.f32.gmra.mrb[0].mxu0 %v227
    %v580 = vpop.f32.mrb[0].mxu0
    %v581 = vadd.f32 %v85, %v580
    %v582 = vpop.f32.mrb[0].mxu0
    %583 = vmatprep.mubr.f32.mxu0 0.0
    %584 = vmatmul.mubr.f32.gmra.mrb[0].mxu0 %v230
    %v585 = vpop.f32.mrb[0].mxu0
    %v586 = vadd.f32 %v85, %v585
    %v587 = vpop.f32.mrb[0].mxu0
    %588 = vmatprep.mubr.f32.mxu0 0.0
    %589 = vmatmul.mubr.f32.gmra.mrb[0].mxu0 %v233
    %v590 = vpop.f32.mrb[0].mxu0
    %v591 = vadd.f32 %v85, %v590
    %v592 = vpop.f32.mrb[0].mxu0
    %593 = vmatprep.mubr.f32.mxu0 0.0
    %594 = vmatmul.mubr.f32.gmra.mrb[0].mxu0 %v236
    %v595 = vpop.f32.mrb[0].mxu0
    %v596 = vadd.f32 %v85, %v595
    %v597 = vpop.f32.mrb[0].mxu0
    %598 = vmatprep.mubr.f32.mxu0 0.0
    %599 = vmatmul.mubr.f32.gmra.mrb[0].mxu0 %v239
    %v600 = vpop.f32.mrb[0].mxu0
    %v601 = vadd.f32 %v85, %v600
    %v602 = vpop.f32.mrb[0].mxu0
    %603 = vmatprep.mubr.f32.mxu0 0.0
    %604 = vmatmul.mubr.f32.gmra.mrb[0].mxu0 %v242
    %v605 = vpop.f32.mrb[0].mxu0
    %v606 = vadd.f32 %v85, %v605
    %v607 = vpop.f32.mrb[0].mxu0
    %608 = vmatprep.mubr.f32.mxu0 0.0
    %609 = vmatmul.mubr.f32.gmra.mrb[0].mxu0 %v245
    %v610 = vpop.f32.mrb[0].mxu0
    %v611 = vadd.f32 %v85, %v610
    %v612 = vpop.f32.mrb[0].mxu0
    %613 = vmatprep.mubr.f32.mxu0 0.0
    %614 = vmatmul.mubr.f32.gmra.mrb[0].mxu0 %v248
    %v615 = vpop.f32.mrb[0].mxu0
    %v616 = vadd.f32 %v85, %v615
    %v617 = vpop.f32.mrb[0].mxu0
    %618 = vmatprep.mubr.f32.mxu0 0.0
    %619 = vmatmul.mubr.f32.gmra.mrb[0].mxu0 %v251
    %v620 = vpop.f32.mrb[0].mxu0
    %v621 = vadd.f32 %v85, %v620
    %v622 = vpop.f32.mrb[0].mxu0
    %623 = vmatprep.mubr.f32.mxu0 0.0
    %624 = vmatmul.mubr.f32.gmra.mrb[0].mxu0 %v254
    %v625 = vpop.f32.mrb[0].mxu0
    %v626 = vadd.f32 %v85, %v625
    %v627 = vpop.f32.mrb[0].mxu0
    %628 = vmatprep.mubr.f32.mxu0 0.0
    %629 = vmatmul.mubr.f32.gmra.mrb[0].mxu0 %v257
    %v630 = vpop.f32.mrb[0].mxu0
    %v631 = vadd.f32 %v85, %v630
    %v632 = vpop.f32.mrb[0].mxu0
    %633 = vmatprep.mubr.f32.mxu0 0.0
    %634 = vmatmul.mubr.f32.gmra.mrb[0].mxu0 %v260
    %v635 = vpop.f32.mrb[0].mxu0
    %v636 = vadd.f32 %v85, %v635
    %v637 = vpop.f32.mrb[0].mxu0
    %638 = vmatprep.mubr.f32.mxu0 0.0
    %639 = vmatmul.mubr.f32.gmra.mrb[0].mxu0 %v263
    %v640 = vpop.f32.mrb[0].mxu0
    %v641 = vadd.f32 %v85, %v640
    %v642 = vpop.f32.mrb[0].mxu0
    %643 = vmatprep.mubr.f32.mxu0 0.0
    %644 = vmatmul.mubr.f32.gmra.mrb[0].mxu0 %v266
    %v645 = vpop.f32.mrb[0].mxu0
    %v646 = vadd.f32 %v85, %v645
    %v647 = vpop.f32.mrb[0].mxu0
    %648 = vmatprep.mubr.f32.mxu0 0.0
    %649 = vmatmul.mubr.f32.gmra.mrb[0].mxu0 %v269
    %v650 = vpop.f32.mrb[0].mxu0
    %v651 = vadd.f32 %v85, %v650
    %v652 = vpop.f32.mrb[0].mxu0
    %653 = vmatprep.mubr.f32.mxu0 0.0
    %654 = vmatmul.mubr.f32.gmra.mrb[0].mxu0 %v272
    %v655 = vpop.f32.mrb[0].mxu0
    %v656 = vadd.f32 %v85, %v655
    %v657 = vpop.f32.mrb[0].mxu0
    %658 = vmatprep.mubr.f32.mxu0 0.0
    %659 = vmatmul.mubr.f32.gmra.mrb[0].mxu0 %v275
    %v660 = vpop.f32.mrb[0].mxu0
    %v661 = vadd.f32 %v85, %v660
    %v662 = vpop.f32.mrb[0].mxu0
    %663 = vmatprep.mubr.f32.mxu0 0.0
    %664 = vmatmul.mubr.f32.gmra.mrb[0].mxu0 %v278
    %v665 = vpop.f32.mrb[0].mxu0
    %v666 = vadd.f32 %v85, %v665
    %v667 = vpop.f32.mrb[0].mxu0
    %668 = vdwg.mxu0
    %v669 = vmax.f32 %v351, 0.0
    %v670 = vmax.f32 %v356, 0.0
    %v671 = vmax.f32 %v361, 0.0
    %v672 = vmax.f32 %v366, 0.0
    %v673 = vmax.f32 %v371, 0.0
    %v674 = vmax.f32 %v376, 0.0
    %v675 = vmax.f32 %v381, 0.0
    %v676 = vmax.f32 %v386, 0.0
    %v677 = vmax.f32 %v391, 0.0
    %v678 = vmax.f32 %v396, 0.0
    %v679 = vmax.f32 %v401, 0.0
    %v680 = vmax.f32 %v406, 0.0
    %v681 = vmax.f32 %v411, 0.0
    %v682 = vmax.f32 %v416, 0.0
    %v683 = vmax.f32 %v421, 0.0
    %v684 = vmax.f32 %v426, 0.0
    %v685 = vmax.f32 %v431, 0.0
    %v686 = vmax.f32 %v436, 0.0
    %v687 = vmax.f32 %v441, 0.0
    %v688 = vmax.f32 %v446, 0.0
    %v689 = vmax.f32 %v451, 0.0
    %v690 = vmax.f32 %v456, 0.0
    %v691 = vmax.f32 %v461, 0.0
    %v692 = vmax.f32 %v466, 0.0
    %v693 = vmax.f32 %v471, 0.0
    %v694 = vmax.f32 %v476, 0.0
    %v695 = vmax.f32 %v481, 0.0
    %v696 = vmax.f32 %v486, 0.0
    %v697 = vmax.f32 %v491, 0.0
    %v698 = vmax.f32 %v496, 0.0
    %v699 = vmax.f32 %v501, 0.0
    %v700 = vmax.f32 %v506, 0.0
    %v701 = vmax.f32 %v511, 0.0
    %v702 = vmax.f32 %v516, 0.0
    %v703 = vmax.f32 %v521, 0.0
    %v704 = vmax.f32 %v526, 0.0
    %v705 = vmax.f32 %v531, 0.0
    %v706 = vmax.f32 %v536, 0.0
    %v707 = vmax.f32 %v541, 0.0
    %v708 = vmax.f32 %v546, 0.0
    %v709 = vmax.f32 %v551, 0.0
    %v710 = vmax.f32 %v556, 0.0
    %v711 = vmax.f32 %v561, 0.0
    %v712 = vmax.f32 %v566, 0.0
    %v713 = vmax.f32 %v571, 0.0
    %v714 = vmax.f32 %v576, 0.0
    %v715 = vmax.f32 %v581, 0.0
    %v716 = vmax.f32 %v586, 0.0
    %v717 = vmax.f32 %v591, 0.0
    %v718 = vmax.f32 %v596, 0.0
    %v719 = vmax.f32 %v601, 0.0
    %v720 = vmax.f32 %v606, 0.0
    %v721 = vmax.f32 %v611, 0.0
    %v722 = vmax.f32 %v616, 0.0
    %v723 = vmax.f32 %v621, 0.0
    %v724 = vmax.f32 %v626, 0.0
    %v725 = vmax.f32 %v631, 0.0
    %v726 = vmax.f32 %v636, 0.0
    %v727 = vmax.f32 %v641, 0.0
    %v728 = vmax.f32 %v646, 0.0
    %v729 = vmax.f32 %v651, 0.0
    %v730 = vmax.f32 %v656, 0.0
    %v731 = vmax.f32 %v661, 0.0
    %v732 = vmax.f32 %v666, 0.0
    %vm733 = vcmask 130048
    %v734 = vsel %vm733, %v669, -inf
    %v735 = vrot.slane %v734, 4
    %v736 = vmax.f32 %v734, %v735
    %v737 = vrot.slane %v736, 2
    %v738 = vmax.f32 %v736, %v737
    %v739 = vrot.slane %v738, 1
    %v740 = vmax.f32 %v738, %v739
    %v741 = vsel %vm733, %v670, -inf
    %v742 = vrot.slane %v741, 4
    %v743 = vmax.f32 %v741, %v742
    %v744 = vrot.slane %v743, 2
    %v745 = vmax.f32 %v743, %v744
    %v746 = vrot.slane %v745, 1
    %v747 = vmax.f32 %v745, %v746
    %v748 = vsel %vm733, %v671, -inf
    %v749 = vrot.slane %v748, 4
    %v750 = vmax.f32 %v748, %v749
    %v751 = vrot.slane %v750, 2
    %v752 = vmax.f32 %v750, %v751
    %v753 = vrot.slane %v752, 1
    %v754 = vmax.f32 %v752, %v753
    %v755 = vsel %vm733, %v672, -inf
    %v756 = vrot.slane %v755, 4
    %v757 = vmax.f32 %v755, %v756
    %v758 = vrot.slane %v757, 2
    %v759 = vmax.f32 %v757, %v758
    %v760 = vrot.slane %v759, 1
    %v761 = vmax.f32 %v759, %v760
    %v762 = vsel %vm733, %v673, -inf
    %v763 = vrot.slane %v762, 4
    %v764 = vmax.f32 %v762, %v763
    %v765 = vrot.slane %v764, 2
    %v766 = vmax.f32 %v764, %v765
    %v767 = vrot.slane %v766, 1
    %v768 = vmax.f32 %v766, %v767
    %v769 = vsel %vm733, %v674, -inf
    %v770 = vrot.slane %v769, 4
    %v771 = vmax.f32 %v769, %v770
    %v772 = vrot.slane %v771, 2
    %v773 = vmax.f32 %v771, %v772
    %v774 = vrot.slane %v773, 1
    %v775 = vmax.f32 %v773, %v774
    %v776 = vsel %vm733, %v675, -inf
    %v777 = vrot.slane %v776, 4
    %v778 = vmax.f32 %v776, %v777
    %v779 = vrot.slane %v778, 2
    %v780 = vmax.f32 %v778, %v779
    %v781 = vrot.slane %v780, 1
    %v782 = vmax.f32 %v780, %v781
    %v783 = vsel %vm733, %v676, -inf
    %v784 = vrot.slane %v783, 4
    %v785 = vmax.f32 %v783, %v784
    %v786 = vrot.slane %v785, 2
    %v787 = vmax.f32 %v785, %v786
    %v788 = vrot.slane %v787, 1
    %v789 = vmax.f32 %v787, %v788
    %v790 = vsel %vm733, %v677, -inf
    %v791 = vrot.slane %v790, 4
    %v792 = vmax.f32 %v790, %v791
    %v793 = vrot.slane %v792, 2
    %v794 = vmax.f32 %v792, %v793
    %v795 = vrot.slane %v794, 1
    %v796 = vmax.f32 %v794, %v795
    %v797 = vsel %vm733, %v678, -inf
    %v798 = vrot.slane %v797, 4
    %v799 = vmax.f32 %v797, %v798
    %v800 = vrot.slane %v799, 2
    %v801 = vmax.f32 %v799, %v800
    %v802 = vrot.slane %v801, 1
    %v803 = vmax.f32 %v801, %v802
    %v804 = vsel %vm733, %v679, -inf
    %v805 = vrot.slane %v804, 4
    %v806 = vmax.f32 %v804, %v805
    %v807 = vrot.slane %v806, 2
    %v808 = vmax.f32 %v806, %v807
    %v809 = vrot.slane %v808, 1
    %v810 = vmax.f32 %v808, %v809
    %v811 = vsel %vm733, %v680, -inf
    %v812 = vrot.slane %v811, 4
    %v813 = vmax.f32 %v811, %v812
    %v814 = vrot.slane %v813, 2
    %v815 = vmax.f32 %v813, %v814
    %v816 = vrot.slane %v815, 1
    %v817 = vmax.f32 %v815, %v816
    %v818 = vsel %vm733, %v681, -inf
    %v819 = vrot.slane %v818, 4
    %v820 = vmax.f32 %v818, %v819
    %v821 = vrot.slane %v820, 2
    %v822 = vmax.f32 %v820, %v821
    %v823 = vrot.slane %v822, 1
    %v824 = vmax.f32 %v822, %v823
    %v825 = vsel %vm733, %v682, -inf
    %v826 = vrot.slane %v825, 4
    %v827 = vmax.f32 %v825, %v826
    %v828 = vrot.slane %v827, 2
    %v829 = vmax.f32 %v827, %v828
    %v830 = vrot.slane %v829, 1
    %v831 = vmax.f32 %v829, %v830
    %v832 = vsel %vm733, %v683, -inf
    %v833 = vrot.slane %v832, 4
    %v834 = vmax.f32 %v832, %v833
    %v835 = vrot.slane %v834, 2
    %v836 = vmax.f32 %v834, %v835
    %v837 = vrot.slane %v836, 1
    %v838 = vmax.f32 %v836, %v837
    %v839 = vsel %vm733, %v684, -inf
    %v840 = vrot.slane %v839, 4
    %v841 = vmax.f32 %v839, %v840
    %v842 = vrot.slane %v841, 2
    %v843 = vmax.f32 %v841, %v842
    %v844 = vrot.slane %v843, 1
    %v845 = vmax.f32 %v843, %v844
    %v846 = vsel %vm733, %v685, -inf
    %v847 = vrot.slane %v846, 4
    %v848 = vmax.f32 %v846, %v847
    %v849 = vrot.slane %v848, 2
    %v850 = vmax.f32 %v848, %v849
    %v851 = vrot.slane %v850, 1
    %v852 = vmax.f32 %v850, %v851
    %v853 = vsel %vm733, %v686, -inf
    %v854 = vrot.slane %v853, 4
    %v855 = vmax.f32 %v853, %v854
    %v856 = vrot.slane %v855, 2
    %v857 = vmax.f32 %v855, %v856
    %v858 = vrot.slane %v857, 1
    %v859 = vmax.f32 %v857, %v858
    %v860 = vsel %vm733, %v687, -inf
    %v861 = vrot.slane %v860, 4
    %v862 = vmax.f32 %v860, %v861
    %v863 = vrot.slane %v862, 2
    %v864 = vmax.f32 %v862, %v863
    %v865 = vrot.slane %v864, 1
    %v866 = vmax.f32 %v864, %v865
    %v867 = vsel %vm733, %v688, -inf
    %v868 = vrot.slane %v867, 4
    %v869 = vmax.f32 %v867, %v868
    %v870 = vrot.slane %v869, 2
    %v871 = vmax.f32 %v869, %v870
    %v872 = vrot.slane %v871, 1
    %v873 = vmax.f32 %v871, %v872
    %v874 = vsel %vm733, %v689, -inf
    %v875 = vrot.slane %v874, 4
    %v876 = vmax.f32 %v874, %v875
    %v877 = vrot.slane %v876, 2
    %v878 = vmax.f32 %v876, %v877
    %v879 = vrot.slane %v878, 1
    %v880 = vmax.f32 %v878, %v879
    %v881 = vsel %vm733, %v690, -inf
    %v882 = vrot.slane %v881, 4
    %v883 = vmax.f32 %v881, %v882
    %v884 = vrot.slane %v883, 2
    %v885 = vmax.f32 %v883, %v884
    %v886 = vrot.slane %v885, 1
    %v887 = vmax.f32 %v885, %v886
    %v888 = vsel %vm733, %v691, -inf
    %v889 = vrot.slane %v888, 4
    %v890 = vmax.f32 %v888, %v889
    %v891 = vrot.slane %v890, 2
    %v892 = vmax.f32 %v890, %v891
    %v893 = vrot.slane %v892, 1
    %v894 = vmax.f32 %v892, %v893
    %v895 = vsel %vm733, %v692, -inf
    %v896 = vrot.slane %v895, 4
    %v897 = vmax.f32 %v895, %v896
    %v898 = vrot.slane %v897, 2
    %v899 = vmax.f32 %v897, %v898
    %v900 = vrot.slane %v899, 1
    %v901 = vmax.f32 %v899, %v900
    %v902 = vsel %vm733, %v693, -inf
    %v903 = vrot.slane %v902, 4
    %v904 = vmax.f32 %v902, %v903
    %v905 = vrot.slane %v904, 2
    %v906 = vmax.f32 %v904, %v905
    %v907 = vrot.slane %v906, 1
    %v908 = vmax.f32 %v906, %v907
    %v909 = vsel %vm733, %v694, -inf
    %v910 = vrot.slane %v909, 4
    %v911 = vmax.f32 %v909, %v910
    %v912 = vrot.slane %v911, 2
    %v913 = vmax.f32 %v911, %v912
    %v914 = vrot.slane %v913, 1
    %v915 = vmax.f32 %v913, %v914
    %v916 = vsel %vm733, %v695, -inf
    %v917 = vrot.slane %v916, 4
    %v918 = vmax.f32 %v916, %v917
    %v919 = vrot.slane %v918, 2
    %v920 = vmax.f32 %v918, %v919
    %v921 = vrot.slane %v920, 1
    %v922 = vmax.f32 %v920, %v921
    %v923 = vsel %vm733, %v696, -inf
    %v924 = vrot.slane %v923, 4
    %v925 = vmax.f32 %v923, %v924
    %v926 = vrot.slane %v925, 2
    %v927 = vmax.f32 %v925, %v926
    %v928 = vrot.slane %v927, 1
    %v929 = vmax.f32 %v927, %v928
    %v930 = vsel %vm733, %v697, -inf
    %v931 = vrot.slane %v930, 4
    %v932 = vmax.f32 %v930, %v931
    %v933 = vrot.slane %v932, 2
    %v934 = vmax.f32 %v932, %v933
    %v935 = vrot.slane %v934, 1
    %v936 = vmax.f32 %v934, %v935
    %v937 = vsel %vm733, %v698, -inf
    %v938 = vrot.slane %v937, 4
    %v939 = vmax.f32 %v937, %v938
    %v940 = vrot.slane %v939, 2
    %v941 = vmax.f32 %v939, %v940
    %v942 = vrot.slane %v941, 1
    %v943 = vmax.f32 %v941, %v942
    %v944 = vsel %vm733, %v699, -inf
    %v945 = vrot.slane %v944, 4
    %v946 = vmax.f32 %v944, %v945
    %v947 = vrot.slane %v946, 2
    %v948 = vmax.f32 %v946, %v947
    %v949 = vrot.slane %v948, 1
    %v950 = vmax.f32 %v948, %v949
    %v951 = vsel %vm733, %v700, -inf
    %v952 = vrot.slane %v951, 4
    %v953 = vmax.f32 %v951, %v952
    %v954 = vrot.slane %v953, 2
    %v955 = vmax.f32 %v953, %v954
    %v956 = vrot.slane %v955, 1
    %v957 = vmax.f32 %v955, %v956
    %v958 = vsel %vm733, %v701, -inf
    %v959 = vrot.slane %v958, 4
    %v960 = vmax.f32 %v958, %v959
    %v961 = vrot.slane %v960, 2
    %v962 = vmax.f32 %v960, %v961
    %v963 = vrot.slane %v962, 1
    %v964 = vmax.f32 %v962, %v963
    %v965 = vsel %vm733, %v702, -inf
    %v966 = vrot.slane %v965, 4
    %v967 = vmax.f32 %v965, %v966
    %v968 = vrot.slane %v967, 2
    %v969 = vmax.f32 %v967, %v968
    %v970 = vrot.slane %v969, 1
    %v971 = vmax.f32 %v969, %v970
    %v972 = vsel %vm733, %v703, -inf
    %v973 = vrot.slane %v972, 4
    %v974 = vmax.f32 %v972, %v973
    %v975 = vrot.slane %v974, 2
    %v976 = vmax.f32 %v974, %v975
    %v977 = vrot.slane %v976, 1
    %v978 = vmax.f32 %v976, %v977
    %v979 = vsel %vm733, %v704, -inf
    %v980 = vrot.slane %v979, 4
    %v981 = vmax.f32 %v979, %v980
    %v982 = vrot.slane %v981, 2
    %v983 = vmax.f32 %v981, %v982
    %v984 = vrot.slane %v983, 1
    %v985 = vmax.f32 %v983, %v984
    %v986 = vsel %vm733, %v705, -inf
    %v987 = vrot.slane %v986, 4
    %v988 = vmax.f32 %v986, %v987
    %v989 = vrot.slane %v988, 2
    %v990 = vmax.f32 %v988, %v989
    %v991 = vrot.slane %v990, 1
    %v992 = vmax.f32 %v990, %v991
    %v993 = vsel %vm733, %v706, -inf
    %v994 = vrot.slane %v993, 4
    %v995 = vmax.f32 %v993, %v994
    %v996 = vrot.slane %v995, 2
    %v997 = vmax.f32 %v995, %v996
    %v998 = vrot.slane %v997, 1
    %v999 = vmax.f32 %v997, %v998
    %v1000 = vsel %vm733, %v707, -inf
    %v1001 = vrot.slane %v1000, 4
    %v1002 = vmax.f32 %v1000, %v1001
    %v1003 = vrot.slane %v1002, 2
    %v1004 = vmax.f32 %v1002, %v1003
    %v1005 = vrot.slane %v1004, 1
    %v1006 = vmax.f32 %v1004, %v1005
    %v1007 = vsel %vm733, %v708, -inf
    %v1008 = vrot.slane %v1007, 4
    %v1009 = vmax.f32 %v1007, %v1008
    %v1010 = vrot.slane %v1009, 2
    %v1011 = vmax.f32 %v1009, %v1010
    %v1012 = vrot.slane %v1011, 1
    %v1013 = vmax.f32 %v1011, %v1012
    %v1014 = vsel %vm733, %v709, -inf
    %v1015 = vrot.slane %v1014, 4
    %v1016 = vmax.f32 %v1014, %v1015
    %v1017 = vrot.slane %v1016, 2
    %v1018 = vmax.f32 %v1016, %v1017
    %v1019 = vrot.slane %v1018, 1
    %v1020 = vmax.f32 %v1018, %v1019
    %v1021 = vsel %vm733, %v710, -inf
    %v1022 = vrot.slane %v1021, 4
    %v1023 = vmax.f32 %v1021, %v1022
    %v1024 = vrot.slane %v1023, 2
    %v1025 = vmax.f32 %v1023, %v1024
    %v1026 = vrot.slane %v1025, 1
    %v1027 = vmax.f32 %v1025, %v1026
    %v1028 = vsel %vm733, %v711, -inf
    %v1029 = vrot.slane %v1028, 4
    %v1030 = vmax.f32 %v1028, %v1029
    %v1031 = vrot.slane %v1030, 2
    %v1032 = vmax.f32 %v1030, %v1031
    %v1033 = vrot.slane %v1032, 1
    %v1034 = vmax.f32 %v1032, %v1033
    %v1035 = vsel %vm733, %v712, -inf
    %v1036 = vrot.slane %v1035, 4
    %v1037 = vmax.f32 %v1035, %v1036
    %v1038 = vrot.slane %v1037, 2
    %v1039 = vmax.f32 %v1037, %v1038
    %v1040 = vrot.slane %v1039, 1
    %v1041 = vmax.f32 %v1039, %v1040
    %v1042 = vsel %vm733, %v713, -inf
    %v1043 = vrot.slane %v1042, 4
    %v1044 = vmax.f32 %v1042, %v1043
    %v1045 = vrot.slane %v1044, 2
    %v1046 = vmax.f32 %v1044, %v1045
    %v1047 = vrot.slane %v1046, 1
    %v1048 = vmax.f32 %v1046, %v1047
    %v1049 = vsel %vm733, %v714, -inf
    %v1050 = vrot.slane %v1049, 4
    %v1051 = vmax.f32 %v1049, %v1050
    %v1052 = vrot.slane %v1051, 2
    %v1053 = vmax.f32 %v1051, %v1052
    %v1054 = vrot.slane %v1053, 1
    %v1055 = vmax.f32 %v1053, %v1054
    %v1056 = vsel %vm733, %v715, -inf
    %v1057 = vrot.slane %v1056, 4
    %v1058 = vmax.f32 %v1056, %v1057
    %v1059 = vrot.slane %v1058, 2
    %v1060 = vmax.f32 %v1058, %v1059
    %v1061 = vrot.slane %v1060, 1
    %v1062 = vmax.f32 %v1060, %v1061
    %v1063 = vsel %vm733, %v716, -inf
    %v1064 = vrot.slane %v1063, 4
    %v1065 = vmax.f32 %v1063, %v1064
    %v1066 = vrot.slane %v1065, 2
    %v1067 = vmax.f32 %v1065, %v1066
    %v1068 = vrot.slane %v1067, 1
    %v1069 = vmax.f32 %v1067, %v1068
    %v1070 = vsel %vm733, %v717, -inf
    %v1071 = vrot.slane %v1070, 4
    %v1072 = vmax.f32 %v1070, %v1071
    %v1073 = vrot.slane %v1072, 2
    %v1074 = vmax.f32 %v1072, %v1073
    %v1075 = vrot.slane %v1074, 1
    %v1076 = vmax.f32 %v1074, %v1075
    %v1077 = vsel %vm733, %v718, -inf
    %v1078 = vrot.slane %v1077, 4
    %v1079 = vmax.f32 %v1077, %v1078
    %v1080 = vrot.slane %v1079, 2
    %v1081 = vmax.f32 %v1079, %v1080
    %v1082 = vrot.slane %v1081, 1
    %v1083 = vmax.f32 %v1081, %v1082
    %v1084 = vsel %vm733, %v719, -inf
    %v1085 = vrot.slane %v1084, 4
    %v1086 = vmax.f32 %v1084, %v1085
    %v1087 = vrot.slane %v1086, 2
    %v1088 = vmax.f32 %v1086, %v1087
    %v1089 = vrot.slane %v1088, 1
    %v1090 = vmax.f32 %v1088, %v1089
    %v1091 = vsel %vm733, %v720, -inf
    %v1092 = vrot.slane %v1091, 4
    %v1093 = vmax.f32 %v1091, %v1092
    %v1094 = vrot.slane %v1093, 2
    %v1095 = vmax.f32 %v1093, %v1094
    %v1096 = vrot.slane %v1095, 1
    %v1097 = vmax.f32 %v1095, %v1096
    %v1098 = vsel %vm733, %v721, -inf
    %v1099 = vrot.slane %v1098, 4
    %v1100 = vmax.f32 %v1098, %v1099
    %v1101 = vrot.slane %v1100, 2
    %v1102 = vmax.f32 %v1100, %v1101
    %v1103 = vrot.slane %v1102, 1
    %v1104 = vmax.f32 %v1102, %v1103
    %v1105 = vsel %vm733, %v722, -inf
    %v1106 = vrot.slane %v1105, 4
    %v1107 = vmax.f32 %v1105, %v1106
    %v1108 = vrot.slane %v1107, 2
    %v1109 = vmax.f32 %v1107, %v1108
    %v1110 = vrot.slane %v1109, 1
    %v1111 = vmax.f32 %v1109, %v1110
    %v1112 = vsel %vm733, %v723, -inf
    %v1113 = vrot.slane %v1112, 4
    %v1114 = vmax.f32 %v1112, %v1113
    %v1115 = vrot.slane %v1114, 2
    %v1116 = vmax.f32 %v1114, %v1115
    %v1117 = vrot.slane %v1116, 1
    %v1118 = vmax.f32 %v1116, %v1117
    %v1119 = vsel %vm733, %v724, -inf
    %v1120 = vrot.slane %v1119, 4
    %v1121 = vmax.f32 %v1119, %v1120
    %v1122 = vrot.slane %v1121, 2
    %v1123 = vmax.f32 %v1121, %v1122
    %v1124 = vrot.slane %v1123, 1
    %v1125 = vmax.f32 %v1123, %v1124
    %v1126 = vsel %vm733, %v725, -inf
    %v1127 = vrot.slane %v1126, 4
    %v1128 = vmax.f32 %v1126, %v1127
    %v1129 = vrot.slane %v1128, 2
    %v1130 = vmax.f32 %v1128, %v1129
    %v1131 = vrot.slane %v1130, 1
    %v1132 = vmax.f32 %v1130, %v1131
    %v1133 = vsel %vm733, %v726, -inf
    %v1134 = vrot.slane %v1133, 4
    %v1135 = vmax.f32 %v1133, %v1134
    %v1136 = vrot.slane %v1135, 2
    %v1137 = vmax.f32 %v1135, %v1136
    %v1138 = vrot.slane %v1137, 1
    %v1139 = vmax.f32 %v1137, %v1138
    %v1140 = vsel %vm733, %v727, -inf
    %v1141 = vrot.slane %v1140, 4
    %v1142 = vmax.f32 %v1140, %v1141
    %v1143 = vrot.slane %v1142, 2
    %v1144 = vmax.f32 %v1142, %v1143
    %v1145 = vrot.slane %v1144, 1
    %v1146 = vmax.f32 %v1144, %v1145
    %v1147 = vsel %vm733, %v728, -inf
    %v1148 = vrot.slane %v1147, 4
    %v1149 = vmax.f32 %v1147, %v1148
    %v1150 = vrot.slane %v1149, 2
    %v1151 = vmax.f32 %v1149, %v1150
    %v1152 = vrot.slane %v1151, 1
    %v1153 = vmax.f32 %v1151, %v1152
    %v1154 = vsel %vm733, %v729, -inf
    %v1155 = vrot.slane %v1154, 4
    %v1156 = vmax.f32 %v1154, %v1155
    %v1157 = vrot.slane %v1156, 2
    %v1158 = vmax.f32 %v1156, %v1157
    %v1159 = vrot.slane %v1158, 1
    %v1160 = vmax.f32 %v1158, %v1159
    %v1161 = vsel %vm733, %v730, -inf
    %v1162 = vrot.slane %v1161, 4
    %v1163 = vmax.f32 %v1161, %v1162
    %v1164 = vrot.slane %v1163, 2
    %v1165 = vmax.f32 %v1163, %v1164
    %v1166 = vrot.slane %v1165, 1
    %v1167 = vmax.f32 %v1165, %v1166
    %v1168 = vsel %vm733, %v731, -inf
    %v1169 = vrot.slane %v1168, 4
    %v1170 = vmax.f32 %v1168, %v1169
    %v1171 = vrot.slane %v1170, 2
    %v1172 = vmax.f32 %v1170, %v1171
    %v1173 = vrot.slane %v1172, 1
    %v1174 = vmax.f32 %v1172, %v1173
    %v1175 = vsel %vm733, %v732, -inf
    %v1176 = vrot.slane %v1175, 4
    %v1177 = vmax.f32 %v1175, %v1176
    %v1178 = vrot.slane %v1177, 2
    %v1179 = vmax.f32 %v1177, %v1178
    %v1180 = vrot.slane %v1179, 1
    %v1181 = vmax.f32 %v1179, %v1180
    %v1246 = vrot.slane %v670, 7
    %vm1247 = vcmask 1041409
    %v1248 = vsel %vm1247, %v1246, %v669
    %v1249 = vrot.slane %v671, 6
    %vm1250 = vcmask 1042434
    %v1251 = vsel %vm1250, %v1249, %v1248
    %v1252 = vrot.slane %v672, 5
    %vm1253 = vcmask 1043459
    %v1254 = vsel %vm1253, %v1252, %v1251
    %v1255 = vrot.slane %v673, 4
    %vm1256 = vcmask 1044484
    %v1257 = vsel %vm1256, %v1255, %v1254
    %v1258 = vrot.slane %v674, 3
    %vm1259 = vcmask 1045509
    %v1260 = vsel %vm1259, %v1258, %v1257
    %v1261 = vrot.slane %v675, 2
    %vm1262 = vcmask 1046534
    %v1263 = vsel %vm1262, %v1261, %v1260
    %v1264 = vrot.slane %v676, 1
    %vm1265 = vcmask 1047559
    %v1266 = vsel %vm1265, %v1264, %v1263
    %v1267 = vrot.slane %v678, 7
    %v1268 = vsel %vm1247, %v1267, %v677
    %v1269 = vrot.slane %v679, 6
    %v1270 = vsel %vm1250, %v1269, %v1268
    %v1271 = vrot.slane %v680, 5
    %v1272 = vsel %vm1253, %v1271, %v1270
    %v1273 = vrot.slane %v681, 4
    %v1274 = vsel %vm1256, %v1273, %v1272
    %v1275 = vrot.slane %v682, 3
    %v1276 = vsel %vm1259, %v1275, %v1274
    %v1277 = vrot.slane %v683, 2
    %v1278 = vsel %vm1262, %v1277, %v1276
    %v1279 = vrot.slane %v684, 1
    %v1280 = vsel %vm1265, %v1279, %v1278
    %v1281 = vrot.slane %v686, 7
    %v1282 = vsel %vm1247, %v1281, %v685
    %v1283 = vrot.slane %v687, 6
    %v1284 = vsel %vm1250, %v1283, %v1282
    %v1285 = vrot.slane %v688, 5
    %v1286 = vsel %vm1253, %v1285, %v1284
    %v1287 = vrot.slane %v689, 4
    %v1288 = vsel %vm1256, %v1287, %v1286
    %v1289 = vrot.slane %v690, 3
    %v1290 = vsel %vm1259, %v1289, %v1288
    %v1291 = vrot.slane %v691, 2
    %v1292 = vsel %vm1262, %v1291, %v1290
    %v1293 = vrot.slane %v692, 1
    %v1294 = vsel %vm1265, %v1293, %v1292
    %v1295 = vrot.slane %v694, 7
    %v1296 = vsel %vm1247, %v1295, %v693
    %v1297 = vrot.slane %v695, 6
    %v1298 = vsel %vm1250, %v1297, %v1296
    %v1299 = vrot.slane %v696, 5
    %v1300 = vsel %vm1253, %v1299, %v1298
    %v1301 = vrot.slane %v697, 4
    %v1302 = vsel %vm1256, %v1301, %v1300
    %v1303 = vrot.slane %v698, 3
    %v1304 = vsel %vm1259, %v1303, %v1302
    %v1305 = vrot.slane %v699, 2
    %v1306 = vsel %vm1262, %v1305, %v1304
    %v1307 = vrot.slane %v700, 1
    %v1308 = vsel %vm1265, %v1307, %v1306
    %v1309 = vrot.slane %v702, 7
    %v1310 = vsel %vm1247, %v1309, %v701
    %v1311 = vrot.slane %v703, 6
    %v1312 = vsel %vm1250, %v1311, %v1310
    %v1313 = vrot.slane %v704, 5
    %v1314 = vsel %vm1253, %v1313, %v1312
    %v1315 = vrot.slane %v705, 4
    %v1316 = vsel %vm1256, %v1315, %v1314
    %v1317 = vrot.slane %v706, 3
    %v1318 = vsel %vm1259, %v1317, %v1316
    %v1319 = vrot.slane %v707, 2
    %v1320 = vsel %vm1262, %v1319, %v1318
    %v1321 = vrot.slane %v708, 1
    %v1322 = vsel %vm1265, %v1321, %v1320
    %v1323 = vrot.slane %v710, 7
    %v1324 = vsel %vm1247, %v1323, %v709
    %v1325 = vrot.slane %v711, 6
    %v1326 = vsel %vm1250, %v1325, %v1324
    %v1327 = vrot.slane %v712, 5
    %v1328 = vsel %vm1253, %v1327, %v1326
    %v1329 = vrot.slane %v713, 4
    %v1330 = vsel %vm1256, %v1329, %v1328
    %v1331 = vrot.slane %v714, 3
    %v1332 = vsel %vm1259, %v1331, %v1330
    %v1333 = vrot.slane %v715, 2
    %v1334 = vsel %vm1262, %v1333, %v1332
    %v1335 = vrot.slane %v716, 1
    %v1336 = vsel %vm1265, %v1335, %v1334
    %v1337 = vrot.slane %v718, 7
    %v1338 = vsel %vm1247, %v1337, %v717
    %v1339 = vrot.slane %v719, 6
    %v1340 = vsel %vm1250, %v1339, %v1338
    %v1341 = vrot.slane %v720, 5
    %v1342 = vsel %vm1253, %v1341, %v1340
    %v1343 = vrot.slane %v721, 4
    %v1344 = vsel %vm1256, %v1343, %v1342
    %v1345 = vrot.slane %v722, 3
    %v1346 = vsel %vm1259, %v1345, %v1344
    %v1347 = vrot.slane %v723, 2
    %v1348 = vsel %vm1262, %v1347, %v1346
    %v1349 = vrot.slane %v724, 1
    %v1350 = vsel %vm1265, %v1349, %v1348
    %v1351 = vrot.slane %v726, 7
    %v1352 = vsel %vm1247, %v1351, %v725
    %v1353 = vrot.slane %v727, 6
    %v1354 = vsel %vm1250, %v1353, %v1352
    %v1355 = vrot.slane %v728, 5
    %v1356 = vsel %vm1253, %v1355, %v1354
    %v1357 = vrot.slane %v729, 4
    %v1358 = vsel %vm1256, %v1357, %v1356
    %v1359 = vrot.slane %v730, 3
    %v1360 = vsel %vm1259, %v1359, %v1358
    %v1361 = vrot.slane %v731, 2
    %v1362 = vsel %vm1262, %v1361, %v1360
    %v1363 = vrot.slane %v732, 1
    %v1364 = vsel %vm1265, %v1363, %v1362
    %v1437 = vsel %vm1247, %v747, %v740
    %v1438 = vsel %vm1250, %v754, %v1437
    %v1439 = vsel %vm1253, %v761, %v1438
    %v1440 = vsel %vm1256, %v768, %v1439
    %v1441 = vsel %vm1259, %v775, %v1440
    %v1442 = vsel %vm1262, %v782, %v1441
    %v1443 = vsel %vm1265, %v789, %v1442
    %v1444 = vsel %vm1247, %v803, %v796
    %v1445 = vsel %vm1250, %v810, %v1444
    %v1446 = vsel %vm1253, %v817, %v1445
    %v1447 = vsel %vm1256, %v824, %v1446
    %v1448 = vsel %vm1259, %v831, %v1447
    %v1449 = vsel %vm1262, %v838, %v1448
    %v1450 = vsel %vm1265, %v845, %v1449
    %v1451 = vsel %vm1247, %v859, %v852
    %v1452 = vsel %vm1250, %v866, %v1451
    %v1453 = vsel %vm1253, %v873, %v1452
    %v1454 = vsel %vm1256, %v880, %v1453
    %v1455 = vsel %vm1259, %v887, %v1454
    %v1456 = vsel %vm1262, %v894, %v1455
    %v1457 = vsel %vm1265, %v901, %v1456
    %v1458 = vsel %vm1247, %v915, %v908
    %v1459 = vsel %vm1250, %v922, %v1458
    %v1460 = vsel %vm1253, %v929, %v1459
    %v1461 = vsel %vm1256, %v936, %v1460
    %v1462 = vsel %vm1259, %v943, %v1461
    %v1463 = vsel %vm1262, %v950, %v1462
    %v1464 = vsel %vm1265, %v957, %v1463
    %v1465 = vsel %vm1247, %v971, %v964
    %v1466 = vsel %vm1250, %v978, %v1465
    %v1467 = vsel %vm1253, %v985, %v1466
    %v1468 = vsel %vm1256, %v992, %v1467
    %v1469 = vsel %vm1259, %v999, %v1468
    %v1470 = vsel %vm1262, %v1006, %v1469
    %v1471 = vsel %vm1265, %v1013, %v1470
    %v1472 = vsel %vm1247, %v1027, %v1020
    %v1473 = vsel %vm1250, %v1034, %v1472
    %v1474 = vsel %vm1253, %v1041, %v1473
    %v1475 = vsel %vm1256, %v1048, %v1474
    %v1476 = vsel %vm1259, %v1055, %v1475
    %v1477 = vsel %vm1262, %v1062, %v1476
    %v1478 = vsel %vm1265, %v1069, %v1477
    %v1479 = vsel %vm1247, %v1083, %v1076
    %v1480 = vsel %vm1250, %v1090, %v1479
    %v1481 = vsel %vm1253, %v1097, %v1480
    %v1482 = vsel %vm1256, %v1104, %v1481
    %v1483 = vsel %vm1259, %v1111, %v1482
    %v1484 = vsel %vm1262, %v1118, %v1483
    %v1485 = vsel %vm1265, %v1125, %v1484
    %v1486 = vsel %vm1247, %v1139, %v1132
    %v1487 = vsel %vm1250, %v1146, %v1486
    %v1488 = vsel %vm1253, %v1153, %v1487
    %v1489 = vsel %vm1256, %v1160, %v1488
    %v1490 = vsel %vm1259, %v1167, %v1489
    %v1491 = vsel %vm1262, %v1174, %v1490
    %v1492 = vsel %vm1265, %v1181, %v1491
    %1493 = vrot.lane.b32.xlu0 %v1443, 16
    %v1494 = vpop.permute.xlu0 %1493
    %1495 = vrot.lane.b32.xlu0 %v1450, 16
    %v1496 = vpop.permute.xlu0 %1495
    %1497 = vrot.lane.b32.xlu0 %v1457, 16
    %v1498 = vpop.permute.xlu0 %1497
    %1499 = vrot.lane.b32.xlu0 %v1464, 16
    %v1500 = vpop.permute.xlu0 %1499
    %1501 = vrot.lane.b32.xlu0 %v1471, 16
    %v1502 = vpop.permute.xlu0 %1501
    %1503 = vrot.lane.b32.xlu0 %v1478, 16
    %v1504 = vpop.permute.xlu0 %1503
    %1505 = vrot.lane.b32.xlu0 %v1485, 16
    %v1506 = vpop.permute.xlu0 %1505
    %1507 = vrot.lane.b32.xlu0 %v1492, 16
    %v1508 = vpop.permute.xlu0 %1507
    %v1517 = vsel %vm733, %v1266, %v1494
    %v1518 = vsel %vm733, %v1280, %v1496
    %v1519 = vsel %vm733, %v1294, %v1498
    %v1520 = vsel %vm733, %v1308, %v1500
    %v1521 = vsel %vm733, %v1322, %v1502
    %v1522 = vsel %vm733, %v1336, %v1504
    %v1523 = vsel %vm733, %v1350, %v1506
    %v1524 = vsel %vm733, %v1364, %v1508
    %vm1525 = vcmask 261120
    %1526 = vst.msk [vmem:[#allocation2] sm:$0xff] %vm1525, %v1517
    %1527 = vst.msk [vmem:[#allocation2 + $0x10] sm:$0xff] %vm1525, %v1518
    %1528 = vst.msk [vmem:[#allocation2 + $0x20] sm:$0xff] %vm1525, %v1519
    %1529 = vst.msk [vmem:[#allocation2 + $0x30] sm:$0xff] %vm1525, %v1520
    %1530 = vst.msk [vmem:[#allocation2 + $0x40] sm:$0xff] %vm1525, %v1521
    %1531 = vst.msk [vmem:[#allocation2 + $0x50] sm:$0xff] %vm1525, %v1522
    %1532 = vst.msk [vmem:[#allocation2 + $0x60] sm:$0xff] %vm1525, %v1523
    %1533 = vst.msk [vmem:[#allocation2 + $0x70] sm:$0xff] %vm1525, %v1524
    %v1534 = vsel %vm1250, %v1246, %v669
    %v1535 = vsel %vm1253, %v1249, %v1534
    %v1536 = vsel %vm1256, %v1252, %v1535
    %v1537 = vsel %vm1259, %v1255, %v1536
    %v1538 = vsel %vm1262, %v1258, %v1537
    %v1539 = vsel %vm1265, %v1261, %v1538
    %v1540 = vsel %vm1247, %v677, %v1264
    %v1541 = vsel %vm1250, %v1267, %v1540
    %v1542 = vsel %vm1253, %v1269, %v1541
    %v1543 = vsel %vm1256, %v1271, %v1542
    %v1544 = vsel %vm1259, %v1273, %v1543
    %v1545 = vsel %vm1262, %v1275, %v1544
    %v1546 = vsel %vm1265, %v1277, %v1545
    %v1547 = vsel %vm1247, %v685, %v1279
    %v1548 = vsel %vm1250, %v1281, %v1547
    %v1549 = vsel %vm1253, %v1283, %v1548
    %v1550 = vsel %vm1256, %v1285, %v1549
    %v1551 = vsel %vm1259, %v1287, %v1550
    %v1552 = vsel %vm1262, %v1289, %v1551
    %v1553 = vsel %vm1265, %v1291, %v1552
    %v1554 = vsel %vm1247, %v693, %v1293
    %v1555 = vsel %vm1250, %v1295, %v1554
    %v1556 = vsel %vm1253, %v1297, %v1555
    %v1557 = vsel %vm1256, %v1299, %v1556
    %v1558 = vsel %vm1259, %v1301, %v1557
    %v1559 = vsel %vm1262, %v1303, %v1558
    %v1560 = vsel %vm1265, %v1305, %v1559
    %v1561 = vsel %vm1247, %v701, %v1307
    %v1562 = vsel %vm1250, %v1309, %v1561
    %v1563 = vsel %vm1253, %v1311, %v1562
    %v1564 = vsel %vm1256, %v1313, %v1563
    %v1565 = vsel %vm1259, %v1315, %v1564
    %v1566 = vsel %vm1262, %v1317, %v1565
    %v1567 = vsel %vm1265, %v1319, %v1566
    %v1568 = vsel %vm1247, %v709, %v1321
    %v1569 = vsel %vm1250, %v1323, %v1568
    %v1570 = vsel %vm1253, %v1325, %v1569
    %v1571 = vsel %vm1256, %v1327, %v1570
    %v1572 = vsel %vm1259, %v1329, %v1571
    %v1573 = vsel %vm1262, %v1331, %v1572
    %v1574 = vsel %vm1265, %v1333, %v1573
    %v1575 = vsel %vm1247, %v717, %v1335
    %v1576 = vsel %vm1250, %v1337, %v1575
    %v1577 = vsel %vm1253, %v1339, %v1576
    %v1578 = vsel %vm1256, %v1341, %v1577
    %v1579 = vsel %vm1259, %v1343, %v1578
    %v1580 = vsel %vm1262, %v1345, %v1579
    %v1581 = vsel %vm1265, %v1347, %v1580
    %v1582 = vsel %vm1247, %v725, %v1349
    %v1583 = vsel %vm1250, %v1351, %v1582
    %v1584 = vsel %vm1253, %v1353, %v1583
    %v1585 = vsel %vm1256, %v1355, %v1584
    %v1586 = vsel %vm1259, %v1357, %v1585
    %v1587 = vsel %vm1262, %v1359, %v1586
    %v1588 = vsel %vm1265, %v1361, %v1587
    %v1598 = vsel %vm1250, %v747, %v740
    %v1599 = vsel %vm1253, %v754, %v1598
    %v1600 = vsel %vm1256, %v761, %v1599
    %v1601 = vsel %vm1259, %v768, %v1600
    %v1602 = vsel %vm1262, %v775, %v1601
    %v1603 = vsel %vm1265, %v782, %v1602
    %v1604 = vsel %vm1247, %v796, %v789
    %v1605 = vsel %vm1250, %v803, %v1604
    %v1606 = vsel %vm1253, %v810, %v1605
    %v1607 = vsel %vm1256, %v817, %v1606
    %v1608 = vsel %vm1259, %v824, %v1607
    %v1609 = vsel %vm1262, %v831, %v1608
    %v1610 = vsel %vm1265, %v838, %v1609
    %v1611 = vsel %vm1247, %v852, %v845
    %v1612 = vsel %vm1250, %v859, %v1611
    %v1613 = vsel %vm1253, %v866, %v1612
    %v1614 = vsel %vm1256, %v873, %v1613
    %v1615 = vsel %vm1259, %v880, %v1614
    %v1616 = vsel %vm1262, %v887, %v1615
    %v1617 = vsel %vm1265, %v894, %v1616
    %v1618 = vsel %vm1247, %v908, %v901
    %v1619 = vsel %vm1250, %v915, %v1618
    %v1620 = vsel %vm1253, %v922, %v1619
    %v1621 = vsel %vm1256, %v929, %v1620
    %v1622 = vsel %vm1259, %v936, %v1621
    %v1623 = vsel %vm1262, %v943, %v1622
    %v1624 = vsel %vm1265, %v950, %v1623
    %v1625 = vsel %vm1247, %v964, %v957
    %v1626 = vsel %vm1250, %v971, %v1625
    %v1627 = vsel %vm1253, %v978, %v1626
    %v1628 = vsel %vm1256, %v985, %v1627
    %v1629 = vsel %vm1259, %v992, %v1628
    %v1630 = vsel %vm1262, %v999, %v1629
    %v1631 = vsel %vm1265, %v1006, %v1630
    %v1632 = vsel %vm1247, %v1020, %v1013
    %v1633 = vsel %vm1250, %v1027, %v1632
    %v1634 = vsel %vm1253, %v1034, %v1633
    %v1635 = vsel %vm1256, %v1041, %v1634
    %v1636 = vsel %vm1259, %v1048, %v1635
    %v1637 = vsel %vm1262, %v1055, %v1636
    %v1638 = vsel %vm1265, %v1062, %v1637
    %v1639 = vsel %vm1247, %v1076, %v1069
    %v1640 = vsel %vm1250, %v1083, %v1639
    %v1641 = vsel %vm1253, %v1090, %v1640
    %v1642 = vsel %vm1256, %v1097, %v1641
    %v1643 = vsel %vm1259, %v1104, %v1642
    %v1644 = vsel %vm1262, %v1111, %v1643
    %v1645 = vsel %vm1265, %v1118, %v1644
    %v1646 = vsel %vm1247, %v1132, %v1125
    %v1647 = vsel %vm1250, %v1139, %v1646
    %v1648 = vsel %vm1253, %v1146, %v1647
    %v1649 = vsel %vm1256, %v1153, %v1648
    %v1650 = vsel %vm1259, %v1160, %v1649
    %v1651 = vsel %vm1262, %v1167, %v1650
    %v1652 = vsel %vm1265, %v1174, %v1651
    %1653 = vrot.lane.b32.xlu0 %v1603, 16
    %v1654 = vpop.permute.xlu0 %1653
    %1655 = vrot.lane.b32.xlu0 %v1610, 16
    %v1656 = vpop.permute.xlu0 %1655
    %1657 = vrot.lane.b32.xlu0 %v1617, 16
    %v1658 = vpop.permute.xlu0 %1657
    %1659 = vrot.lane.b32.xlu0 %v1624, 16
    %v1660 = vpop.permute.xlu0 %1659
    %1661 = vrot.lane.b32.xlu0 %v1631, 16
    %v1662 = vpop.permute.xlu0 %1661
    %1663 = vrot.lane.b32.xlu0 %v1638, 16
    %v1664 = vpop.permute.xlu0 %1663
    %1665 = vrot.lane.b32.xlu0 %v1645, 16
    %v1666 = vpop.permute.xlu0 %1665
    %1667 = vrot.lane.b32.xlu0 %v1652, 16
    %v1668 = vpop.permute.xlu0 %1667
    %1669 = vrot.lane.b32.xlu0 %v1181, 16
    %v1670 = vpop.permute.xlu0 %1669
    %v1680 = vsel %vm733, %v1539, %v1654
    %v1681 = vsel %vm733, %v1546, %v1656
    %v1682 = vsel %vm733, %v1553, %v1658
    %v1683 = vsel %vm733, %v1560, %v1660
    %v1684 = vsel %vm733, %v1567, %v1662
    %v1685 = vsel %vm733, %v1574, %v1664
    %v1686 = vsel %vm733, %v1581, %v1666
    %v1687 = vsel %vm733, %v1588, %v1668
    %v1688 = vsel %vm733, %v1363, %v1670
    %vm1698 = vcmask 1046528
    %v1699 = vrot.slane %v1680, 1
    %v1700 = vrot.slane %v1681, 1
    %v1701 = vsel %vm1698, %v1699, %v1700
    %v1702 = vrot.slane %v1682, 1
    %v1703 = vsel %vm1698, %v1700, %v1702
    %v1704 = vrot.slane %v1683, 1
    %v1705 = vsel %vm1698, %v1702, %v1704
    %v1706 = vrot.slane %v1684, 1
    %v1707 = vsel %vm1698, %v1704, %v1706
    %v1708 = vrot.slane %v1685, 1
    %v1709 = vsel %vm1698, %v1706, %v1708
    %v1710 = vrot.slane %v1686, 1
    %v1711 = vsel %vm1698, %v1708, %v1710
    %v1712 = vrot.slane %v1687, 1
    %v1713 = vsel %vm1698, %v1710, %v1712
    %v1714 = vrot.slane %v1688, 1
    %v1715 = vsel %vm1698, %v1712, %v1714
    %1716 = vrot.lane.b32.xlu0 %v1701, 32
    %v1717 = vpop.permute.xlu0 %1716
    %1718 = vrot.lane.b32.xlu0 %v1703, 32
    %v1719 = vpop.permute.xlu0 %1718
    %1720 = vrot.lane.b32.xlu0 %v1705, 32
    %v1721 = vpop.permute.xlu0 %1720
    %1722 = vrot.lane.b32.xlu0 %v1707, 32
    %v1723 = vpop.permute.xlu0 %1722
    %1724 = vrot.lane.b32.xlu0 %v1709, 32
    %v1725 = vpop.permute.xlu0 %1724
    %1726 = vrot.lane.b32.xlu0 %v1711, 32
    %v1727 = vpop.permute.xlu0 %1726
    %1728 = vrot.lane.b32.xlu0 %v1713, 32
    %v1729 = vpop.permute.xlu0 %1728
    %1730 = vrot.lane.b32.xlu0 %v1715, 32
    %v1731 = vpop.permute.xlu0 %1730
    %vm1740 = vcmask 523520
    %1741 = vst.msk [vmem:[#allocation2] sm:$0xff] %vm1740, %v1717
    %1742 = vst.msk [vmem:[#allocation2 + $0x10] sm:$0xff] %vm1740, %v1719
    %1743 = vst.msk [vmem:[#allocation2 + $0x20] sm:$0xff] %vm1740, %v1721
    %1744 = vst.msk [vmem:[#allocation2 + $0x30] sm:$0xff] %vm1740, %v1723
    %1745 = vst.msk [vmem:[#allocation2 + $0x40] sm:$0xff] %vm1740, %v1725
    %1746 = vst.msk [vmem:[#allocation2 + $0x50] sm:$0xff] %vm1740, %v1727
    %1747 = vst.msk [vmem:[#allocation2 + $0x60] sm:$0xff] %vm1740, %v1729
    %1748 = vst.msk [vmem:[#allocation2 + $0x70] sm:$0xff] %vm1740, %v1731
    %v1749 = vsel %vm1253, %v1246, %v669
    %v1750 = vsel %vm1256, %v1249, %v1749
    %v1751 = vsel %vm1259, %v1252, %v1750
    %v1752 = vsel %vm1262, %v1255, %v1751
    %v1753 = vsel %vm1265, %v1258, %v1752
    %v1754 = vsel %vm1247, %v1264, %v1261
    %v1755 = vsel %vm1250, %v677, %v1754
    %v1756 = vsel %vm1253, %v1267, %v1755
    %v1757 = vsel %vm1256, %v1269, %v1756
    %v1758 = vsel %vm1259, %v1271, %v1757
    %v1759 = vsel %vm1262, %v1273, %v1758
    %v1760 = vsel %vm1265, %v1275, %v1759
    %v1761 = vsel %vm1247, %v1279, %v1277
    %v1762 = vsel %vm1250, %v685, %v1761
    %v1763 = vsel %vm1253, %v1281, %v1762
    %v1764 = vsel %vm1256, %v1283, %v1763
    %v1765 = vsel %vm1259, %v1285, %v1764
    %v1766 = vsel %vm1262, %v1287, %v1765
    %v1767 = vsel %vm1265, %v1289, %v1766
    %v1768 = vsel %vm1247, %v1293, %v1291
    %v1769 = vsel %vm1250, %v693, %v1768
    %v1770 = vsel %vm1253, %v1295, %v1769
    %v1771 = vsel %vm1256, %v1297, %v1770
    %v1772 = vsel %vm1259, %v1299, %v1771
    %v1773 = vsel %vm1262, %v1301, %v1772
    %v1774 = vsel %vm1265, %v1303, %v1773
    %v1775 = vsel %vm1247, %v1307, %v1305
    %v1776 = vsel %vm1250, %v701, %v1775
    %v1777 = vsel %vm1253, %v1309, %v1776
    %v1778 = vsel %vm1256, %v1311, %v1777
    %v1779 = vsel %vm1259, %v1313, %v1778
    %v1780 = vsel %vm1262, %v1315, %v1779
    %v1781 = vsel %vm1265, %v1317, %v1780
    %v1782 = vsel %vm1247, %v1321, %v1319
    %v1783 = vsel %vm1250, %v709, %v1782
    %v1784 = vsel %vm1253, %v1323, %v1783
    %v1785 = vsel %vm1256, %v1325, %v1784
    %v1786 = vsel %vm1259, %v1327, %v1785
    %v1787 = vsel %vm1262, %v1329, %v1786
    %v1788 = vsel %vm1265, %v1331, %v1787
    %v1789 = vsel %vm1247, %v1335, %v1333
    %v1790 = vsel %vm1250, %v717, %v1789
    %v1791 = vsel %vm1253, %v1337, %v1790
    %v1792 = vsel %vm1256, %v1339, %v1791
    %v1793 = vsel %vm1259, %v1341, %v1792
    %v1794 = vsel %vm1262, %v1343, %v1793
    %v1795 = vsel %vm1265, %v1345, %v1794
    %v1796 = vsel %vm1247, %v1349, %v1347
    %v1797 = vsel %vm1250, %v725, %v1796
    %v1798 = vsel %vm1253, %v1351, %v1797
    %v1799 = vsel %vm1256, %v1353, %v1798
    %v1800 = vsel %vm1259, %v1355, %v1799
    %v1801 = vsel %vm1262, %v1357, %v1800
    %v1802 = vsel %vm1265, %v1359, %v1801
    %v1803 = vsel %vm1247, %v1363, %v1361
    %v1813 = vsel %vm1253, %v747, %v740
    %v1814 = vsel %vm1256, %v754, %v1813
    %v1815 = vsel %vm1259, %v761, %v1814
    %v1816 = vsel %vm1262, %v768, %v1815
    %v1817 = vsel %vm1265, %v775, %v1816
    %v1818 = vsel %vm1247, %v789, %v782
    %v1819 = vsel %vm1250, %v796, %v1818
    %v1820 = vsel %vm1253, %v803, %v1819
    %v1821 = vsel %vm1256, %v810, %v1820
    %v1822 = vsel %vm1259, %v817, %v1821
    %v1823 = vsel %vm1262, %v824, %v1822
    %v1824 = vsel %vm1265, %v831, %v1823
    %v1825 = vsel %vm1247, %v845, %v838
    %v1826 = vsel %vm1250, %v852, %v1825
    %v1827 = vsel %vm1253, %v859, %v1826
    %v1828 = vsel %vm1256, %v866, %v1827
    %v1829 = vsel %vm1259, %v873, %v1828
    %v1830 = vsel %vm1262, %v880, %v1829
    %v1831 = vsel %vm1265, %v887, %v1830
    %v1832 = vsel %vm1247, %v901, %v894
    %v1833 = vsel %vm1250, %v908, %v1832
    %v1834 = vsel %vm1253, %v915, %v1833
    %v1835 = vsel %vm1256, %v922, %v1834
    %v1836 = vsel %vm1259, %v929, %v1835
    %v1837 = vsel %vm1262, %v936, %v1836
    %v1838 = vsel %vm1265, %v943, %v1837
    %v1839 = vsel %vm1247, %v957, %v950
    %v1840 = vsel %vm1250, %v964, %v1839
    %v1841 = vsel %vm1253, %v971, %v1840
    %v1842 = vsel %vm1256, %v978, %v1841
    %v1843 = vsel %vm1259, %v985, %v1842
    %v1844 = vsel %vm1262, %v992, %v1843
    %v1845 = vsel %vm1265, %v999, %v1844
    %v1846 = vsel %vm1247, %v1013, %v1006
    %v1847 = vsel %vm1250, %v1020, %v1846
    %v1848 = vsel %vm1253, %v1027, %v1847
    %v1849 = vsel %vm1256, %v1034, %v1848
    %v1850 = vsel %vm1259, %v1041, %v1849
    %v1851 = vsel %vm1262, %v1048, %v1850
    %v1852 = vsel %vm1265, %v1055, %v1851
    %v1853 = vsel %vm1247, %v1069, %v1062
    %v1854 = vsel %vm1250, %v1076, %v1853
    %v1855 = vsel %vm1253, %v1083, %v1854
    %v1856 = vsel %vm1256, %v1090, %v1855
    %v1857 = vsel %vm1259, %v1097, %v1856
    %v1858 = vsel %vm1262, %v1104, %v1857
    %v1859 = vsel %vm1265, %v1111, %v1858
    %v1860 = vsel %vm1247, %v1125, %v1118
    %v1861 = vsel %vm1250, %v1132, %v1860
    %v1862 = vsel %vm1253, %v1139, %v1861
    %v1863 = vsel %vm1256, %v1146, %v1862
    %v1864 = vsel %vm1259, %v1153, %v1863
    %v1865 = vsel %vm1262, %v1160, %v1864
    %v1866 = vsel %vm1265, %v1167, %v1865
    %v1867 = vsel %vm1247, %v1181, %v1174
    %1868 = vrot.lane.b32.xlu0 %v1817, 16
    %v1869 = vpop.permute.xlu0 %1868
    %1870 = vrot.lane.b32.xlu0 %v1824, 16
    %v1871 = vpop.permute.xlu0 %1870
    %1872 = vrot.lane.b32.xlu0 %v1831, 16
    %v1873 = vpop.permute.xlu0 %1872
    %1874 = vrot.lane.b32.xlu0 %v1838, 16
    %v1875 = vpop.permute.xlu0 %1874
    %1876 = vrot.lane.b32.xlu0 %v1845, 16
    %v1877 = vpop.permute.xlu0 %1876
    %1878 = vrot.lane.b32.xlu0 %v1852, 16
    %v1879 = vpop.permute.xlu0 %1878
    %1880 = vrot.lane.b32.xlu0 %v1859, 16
    %v1881 = vpop.permute.xlu0 %1880
    %1882 = vrot.lane.b32.xlu0 %v1866, 16
    %v1883 = vpop.permute.xlu0 %1882
    %1884 = vrot.lane.b32.xlu0 %v1867, 16
    %v1885 = vpop.permute.xlu0 %1884
    %v1895 = vsel %vm733, %v1753, %v1869
    %v1896 = vsel %vm733, %v1760, %v1871
    %v1897 = vsel %vm733, %v1767, %v1873
    %v1898 = vsel %vm733, %v1774, %v1875
    %v1899 = vsel %vm733, %v1781, %v1877
    %v1900 = vsel %vm733, %v1788, %v1879
    %v1901 = vsel %vm733, %v1795, %v1881
    %v1902 = vsel %vm733, %v1802, %v1883
    %v1903 = vsel %vm733, %v1803, %v1885
    %vm1913 = vcmask 1045504
    %v1914 = vrot.slane %v1895, 2
    %v1915 = vrot.slane %v1896, 2
    %v1916 = vsel %vm1913, %v1914, %v1915
    %v1917 = vrot.slane %v1897, 2
    %v1918 = vsel %vm1913, %v1915, %v1917
    %v1919 = vrot.slane %v1898, 2
    %v1920 = vsel %vm1913, %v1917, %v1919
    %v1921 = vrot.slane %v1899, 2
    %v1922 = vsel %vm1913, %v1919, %v1921
    %v1923 = vrot.slane %v1900, 2
    %v1924 = vsel %vm1913, %v1921, %v1923
    %v1925 = vrot.slane %v1901, 2
    %v1926 = vsel %vm1913, %v1923, %v1925
    %v1927 = vrot.slane %v1902, 2
    %v1928 = vsel %vm1913, %v1925, %v1927
    %v1929 = vrot.slane %v1903, 2
    %v1930 = vsel %vm1913, %v1927, %v1929
    %1931 = vrot.lane.b32.xlu0 %v1916, 64
    %v1932 = vpop.permute.xlu0 %1931
    %1933 = vrot.lane.b32.xlu0 %v1918, 64
    %v1934 = vpop.permute.xlu0 %1933
    %1935 = vrot.lane.b32.xlu0 %v1920, 64
    %v1936 = vpop.permute.xlu0 %1935
    %1937 = vrot.lane.b32.xlu0 %v1922, 64
    %v1938 = vpop.permute.xlu0 %1937
    %1939 = vrot.lane.b32.xlu0 %v1924, 64
    %v1940 = vpop.permute.xlu0 %1939
    %1941 = vrot.lane.b32.xlu0 %v1926, 64
    %v1942 = vpop.permute.xlu0 %1941
    %1943 = vrot.lane.b32.xlu0 %v1928, 64
    %v1944 = vpop.permute.xlu0 %1943
    %1945 = vrot.lane.b32.xlu0 %v1930, 64
    %v1946 = vpop.permute.xlu0 %1945
    %vm1955 = vcmask 785920
    %1956 = vst.msk [vmem:[#allocation2] sm:$0xff] %vm1955, %v1932
    %1957 = vst.msk [vmem:[#allocation2 + $0x10] sm:$0xff] %vm1955, %v1934
    %1958 = vst.msk [vmem:[#allocation2 + $0x20] sm:$0xff] %vm1955, %v1936
    %1959 = vst.msk [vmem:[#allocation2 + $0x30] sm:$0xff] %vm1955, %v1938
    %1960 = vst.msk [vmem:[#allocation2 + $0x40] sm:$0xff] %vm1955, %v1940
    %1961 = vst.msk [vmem:[#allocation2 + $0x50] sm:$0xff] %vm1955, %v1942
    %1962 = vst.msk [vmem:[#allocation2 + $0x60] sm:$0xff] %vm1955, %v1944
    %1963 = vst.msk [vmem:[#allocation2 + $0x70] sm:$0xff] %vm1955, %v1946
    %v1964 = vsel %vm1256, %v1246, %v669
    %v1965 = vsel %vm1259, %v1249, %v1964
    %v1966 = vsel %vm1262, %v1252, %v1965
    %v1967 = vsel %vm1265, %v1255, %v1966
    %v1968 = vsel %vm1247, %v1261, %v1258
    %v1969 = vsel %vm1250, %v1264, %v1968
    %v1970 = vsel %vm1253, %v677, %v1969
    %v1971 = vsel %vm1256, %v1267, %v1970
    %v1972 = vsel %vm1259, %v1269, %v1971
    %v1973 = vsel %vm1262, %v1271, %v1972
    %v1974 = vsel %vm1265, %v1273, %v1973
    %v1975 = vsel %vm1247, %v1277, %v1275
    %v1976 = vsel %vm1250, %v1279, %v1975
    %v1977 = vsel %vm1253, %v685, %v1976
    %v1978 = vsel %vm1256, %v1281, %v1977
    %v1979 = vsel %vm1259, %v1283, %v1978
    %v1980 = vsel %vm1262, %v1285, %v1979
    %v1981 = vsel %vm1265, %v1287, %v1980
    %v1982 = vsel %vm1247, %v1291, %v1289
    %v1983 = vsel %vm1250, %v1293, %v1982
    %v1984 = vsel %vm1253, %v693, %v1983
    %v1985 = vsel %vm1256, %v1295, %v1984
    %v1986 = vsel %vm1259, %v1297, %v1985
    %v1987 = vsel %vm1262, %v1299, %v1986
    %v1988 = vsel %vm1265, %v1301, %v1987
    %v1989 = vsel %vm1247, %v1305, %v1303
    %v1990 = vsel %vm1250, %v1307, %v1989
    %v1991 = vsel %vm1253, %v701, %v1990
    %v1992 = vsel %vm1256, %v1309, %v1991
    %v1993 = vsel %vm1259, %v1311, %v1992
    %v1994 = vsel %vm1262, %v1313, %v1993
    %v1995 = vsel %vm1265, %v1315, %v1994
    %v1996 = vsel %vm1247, %v1319, %v1317
    %v1997 = vsel %vm1250, %v1321, %v1996
    %v1998 = vsel %vm1253, %v709, %v1997
    %v1999 = vsel %vm1256, %v1323, %v1998
    %v2000 = vsel %vm1259, %v1325, %v1999
    %v2001 = vsel %vm1262, %v1327, %v2000
    %v2002 = vsel %vm1265, %v1329, %v2001
    %v2003 = vsel %vm1247, %v1333, %v1331
    %v2004 = vsel %vm1250, %v1335, %v2003
    %v2005 = vsel %vm1253, %v717, %v2004
    %v2006 = vsel %vm1256, %v1337, %v2005
    %v2007 = vsel %vm1259, %v1339, %v2006
    %v2008 = vsel %vm1262, %v1341, %v2007
    %v2009 = vsel %vm1265, %v1343, %v2008
    %v2010 = vsel %vm1247, %v1347, %v1345
    %v2011 = vsel %vm1250, %v1349, %v2010
    %v2012 = vsel %vm1253, %v725, %v2011
    %v2013 = vsel %vm1256, %v1351, %v2012
    %v2014 = vsel %vm1259, %v1353, %v2013
    %v2015 = vsel %vm1262, %v1355, %v2014
    %v2016 = vsel %vm1265, %v1357, %v2015
    %v2017 = vsel %vm1247, %v1361, %v1359
    %v2018 = vsel %vm1250, %v1363, %v2017
    %v2028 = vsel %vm1256, %v747, %v740
    %v2029 = vsel %vm1259, %v754, %v2028
    %v2030 = vsel %vm1262, %v761, %v2029
    %v2031 = vsel %vm1265, %v768, %v2030
    %v2032 = vsel %vm1247, %v782, %v775
    %v2033 = vsel %vm1250, %v789, %v2032
    %v2034 = vsel %vm1253, %v796, %v2033
    %v2035 = vsel %vm1256, %v803, %v2034
    %v2036 = vsel %vm1259, %v810, %v2035
    %v2037 = vsel %vm1262, %v817, %v2036
    %v2038 = vsel %vm1265, %v824, %v2037
    %v2039 = vsel %vm1247, %v838, %v831
    %v2040 = vsel %vm1250, %v845, %v2039
    %v2041 = vsel %vm1253, %v852, %v2040
    %v2042 = vsel %vm1256, %v859, %v2041
    %v2043 = vsel %vm1259, %v866, %v2042
    %v2044 = vsel %vm1262, %v873, %v2043
    %v2045 = vsel %vm1265, %v880, %v2044
    %v2046 = vsel %vm1247, %v894, %v887
    %v2047 = vsel %vm1250, %v901, %v2046
    %v2048 = vsel %vm1253, %v908, %v2047
    %v2049 = vsel %vm1256, %v915, %v2048
    %v2050 = vsel %vm1259, %v922, %v2049
    %v2051 = vsel %vm1262, %v929, %v2050
    %v2052 = vsel %vm1265, %v936, %v2051
    %v2053 = vsel %vm1247, %v950, %v943
    %v2054 = vsel %vm1250, %v957, %v2053
    %v2055 = vsel %vm1253, %v964, %v2054
    %v2056 = vsel %vm1256, %v971, %v2055
    %v2057 = vsel %vm1259, %v978, %v2056
    %v2058 = vsel %vm1262, %v985, %v2057
    %v2059 = vsel %vm1265, %v992, %v2058
    %v2060 = vsel %vm1247, %v1006, %v999
    %v2061 = vsel %vm1250, %v1013, %v2060
    %v2062 = vsel %vm1253, %v1020, %v2061
    %v2063 = vsel %vm1256, %v1027, %v2062
    %v2064 = vsel %vm1259, %v1034, %v2063
    %v2065 = vsel %vm1262, %v1041, %v2064
    %v2066 = vsel %vm1265, %v1048, %v2065
    %v2067 = vsel %vm1247, %v1062, %v1055
    %v2068 = vsel %vm1250, %v1069, %v2067
    %v2069 = vsel %vm1253, %v1076, %v2068
    %v2070 = vsel %vm1256, %v1083, %v2069
    %v2071 = vsel %vm1259, %v1090, %v2070
    %v2072 = vsel %vm1262, %v1097, %v2071
    %v2073 = vsel %vm1265, %v1104, %v2072
    %v2074 = vsel %vm1247, %v1118, %v1111
    %v2075 = vsel %vm1250, %v1125, %v2074
    %v2076 = vsel %vm1253, %v1132, %v2075
    %v2077 = vsel %vm1256, %v1139, %v2076
    %v2078 = vsel %vm1259, %v1146, %v2077
    %v2079 = vsel %vm1262, %v1153, %v2078
    %v2080 = vsel %vm1265, %v1160, %v2079
    %v2081 = vsel %vm1247, %v1174, %v1167
    %v2082 = vsel %vm1250, %v1181, %v2081
    %2083 = vrot.lane.b32.xlu0 %v2031, 16
    %v2084 = vpop.permute.xlu0 %2083
    %2085 = vrot.lane.b32.xlu0 %v2038, 16
    %v2086 = vpop.permute.xlu0 %2085
    %2087 = vrot.lane.b32.xlu0 %v2045, 16
    %v2088 = vpop.permute.xlu0 %2087
    %2089 = vrot.lane.b32.xlu0 %v2052, 16
    %v2090 = vpop.permute.xlu0 %2089
    %2091 = vrot.lane.b32.xlu0 %v2059, 16
    %v2092 = vpop.permute.xlu0 %2091
    %2093 = vrot.lane.b32.xlu0 %v2066, 16
    %v2094 = vpop.permute.xlu0 %2093
    %2095 = vrot.lane.b32.xlu0 %v2073, 16
    %v2096 = vpop.permute.xlu0 %2095
    %2097 = vrot.lane.b32.xlu0 %v2080, 16
    %v2098 = vpop.permute.xlu0 %2097
    %2099 = vrot.lane.b32.xlu0 %v2082, 16
    %v2100 = vpop.permute.xlu0 %2099
    %v2110 = vsel %vm733, %v1967, %v2084
    %v2111 = vsel %vm733, %v1974, %v2086
    %v2112 = vsel %vm733, %v1981, %v2088
    %v2113 = vsel %vm733, %v1988, %v2090
    %v2114 = vsel %vm733, %v1995, %v2092
    %v2115 = vsel %vm733, %v2002, %v2094
    %v2116 = vsel %vm733, %v2009, %v2096
    %v2117 = vsel %vm733, %v2016, %v2098
    %v2118 = vsel %vm733, %v2018, %v2100
    %vm2128 = vcmask 1044480
    %v2129 = vrot.slane %v2110, 3
    %v2130 = vrot.slane %v2111, 3
    %v2131 = vsel %vm2128, %v2129, %v2130
    %v2132 = vrot.slane %v2112, 3
    %v2133 = vsel %vm2128, %v2130, %v2132
    %v2134 = vrot.slane %v2113, 3
    %v2135 = vsel %vm2128, %v2132, %v2134
    %v2136 = vrot.slane %v2114, 3
    %v2137 = vsel %vm2128, %v2134, %v2136
    %v2138 = vrot.slane %v2115, 3
    %v2139 = vsel %vm2128, %v2136, %v2138
    %v2140 = vrot.slane %v2116, 3
    %v2141 = vsel %vm2128, %v2138, %v2140
    %v2142 = vrot.slane %v2117, 3
    %v2143 = vsel %vm2128, %v2140, %v2142
    %v2144 = vrot.slane %v2118, 3
    %v2145 = vsel %vm2128, %v2142, %v2144
    %2146 = vrot.lane.b32.xlu0 %v2131, 96
    %v2147 = vpop.permute.xlu0 %2146
    %2148 = vrot.lane.b32.xlu0 %v2133, 96
    %v2149 = vpop.permute.xlu0 %2148
    %2150 = vrot.lane.b32.xlu0 %v2135, 96
    %v2151 = vpop.permute.xlu0 %2150
    %2152 = vrot.lane.b32.xlu0 %v2137, 96
    %v2153 = vpop.permute.xlu0 %2152
    %2154 = vrot.lane.b32.xlu0 %v2139, 96
    %v2155 = vpop.permute.xlu0 %2154
    %2156 = vrot.lane.b32.xlu0 %v2141, 96
    %v2157 = vpop.permute.xlu0 %2156
    %2158 = vrot.lane.b32.xlu0 %v2143, 96
    %v2159 = vpop.permute.xlu0 %2158
    %2160 = vrot.lane.b32.xlu0 %v2145, 96
    %v2161 = vpop.permute.xlu0 %2160
    %vm2170 = vcmask 1048320
    %2171 = vst.msk [vmem:[#allocation2] sm:$0xff] %vm2170, %v2147
    %2172 = vst.msk [vmem:[#allocation2 + $0x10] sm:$0xff] %vm2170, %v2149
    %2173 = vst.msk [vmem:[#allocation2 + $0x20] sm:$0xff] %vm2170, %v2151
    %2174 = vst.msk [vmem:[#allocation2 + $0x30] sm:$0xff] %vm2170, %v2153
    %2175 = vst.msk [vmem:[#allocation2 + $0x40] sm:$0xff] %vm2170, %v2155
    %2176 = vst.msk [vmem:[#allocation2 + $0x50] sm:$0xff] %vm2170, %v2157
    %2177 = vst.msk [vmem:[#allocation2 + $0x60] sm:$0xff] %vm2170, %v2159
    %2178 = vst.msk [vmem:[#allocation2 + $0x70] sm:$0xff] %vm2170, %v2161
    %v2179 = vsel %vm1259, %v1246, %v669
    %v2180 = vsel %vm1262, %v1249, %v2179
    %v2181 = vsel %vm1265, %v1252, %v2180
    %v2182 = vsel %vm1247, %v1258, %v1255
    %v2183 = vsel %vm1250, %v1261, %v2182
    %v2184 = vsel %vm1253, %v1264, %v2183
    %v2185 = vsel %vm1256, %v677, %v2184
    %v2186 = vsel %vm1259, %v1267, %v2185
    %v2187 = vsel %vm1262, %v1269, %v2186
    %v2188 = vsel %vm1265, %v1271, %v2187
    %v2189 = vsel %vm1247, %v1275, %v1273
    %v2190 = vsel %vm1250, %v1277, %v2189
    %v2191 = vsel %vm1253, %v1279, %v2190
    %v2192 = vsel %vm1256, %v685, %v2191
    %v2193 = vsel %vm1259, %v1281, %v2192
    %v2194 = vsel %vm1262, %v1283, %v2193
    %v2195 = vsel %vm1265, %v1285, %v2194
    %v2196 = vsel %vm1247, %v1289, %v1287
    %v2197 = vsel %vm1250, %v1291, %v2196
    %v2198 = vsel %vm1253, %v1293, %v2197
    %v2199 = vsel %vm1256, %v693, %v2198
    %v2200 = vsel %vm1259, %v1295, %v2199
    %v2201 = vsel %vm1262, %v1297, %v2200
    %v2202 = vsel %vm1265, %v1299, %v2201
    %v2203 = vsel %vm1247, %v1303, %v1301
    %v2204 = vsel %vm1250, %v1305, %v2203
    %v2205 = vsel %vm1253, %v1307, %v2204
    %v2206 = vsel %vm1256, %v701, %v2205
    %v2207 = vsel %vm1259, %v1309, %v2206
    %v2208 = vsel %vm1262, %v1311, %v2207
    %v2209 = vsel %vm1265, %v1313, %v2208
    %v2210 = vsel %vm1247, %v1317, %v1315
    %v2211 = vsel %vm1250, %v1319, %v2210
    %v2212 = vsel %vm1253, %v1321, %v2211
    %v2213 = vsel %vm1256, %v709, %v2212
    %v2214 = vsel %vm1259, %v1323, %v2213
    %v2215 = vsel %vm1262, %v1325, %v2214
    %v2216 = vsel %vm1265, %v1327, %v2215
    %v2217 = vsel %vm1247, %v1331, %v1329
    %v2218 = vsel %vm1250, %v1333, %v2217
    %v2219 = vsel %vm1253, %v1335, %v2218
    %v2220 = vsel %vm1256, %v717, %v2219
    %v2221 = vsel %vm1259, %v1337, %v2220
    %v2222 = vsel %vm1262, %v1339, %v2221
    %v2223 = vsel %vm1265, %v1341, %v2222
    %v2224 = vsel %vm1247, %v1345, %v1343
    %v2225 = vsel %vm1250, %v1347, %v2224
    %v2226 = vsel %vm1253, %v1349, %v2225
    %v2227 = vsel %vm1256, %v725, %v2226
    %v2228 = vsel %vm1259, %v1351, %v2227
    %v2229 = vsel %vm1262, %v1353, %v2228
    %v2230 = vsel %vm1265, %v1355, %v2229
    %v2231 = vsel %vm1247, %v1359, %v1357
    %v2232 = vsel %vm1250, %v1361, %v2231
    %v2233 = vsel %vm1253, %v1363, %v2232
    %v2243 = vsel %vm1259, %v747, %v740
    %v2244 = vsel %vm1262, %v754, %v2243
    %v2245 = vsel %vm1265, %v761, %v2244
    %v2246 = vsel %vm1247, %v775, %v768
    %v2247 = vsel %vm1250, %v782, %v2246
    %v2248 = vsel %vm1253, %v789, %v2247
    %v2249 = vsel %vm1256, %v796, %v2248
    %v2250 = vsel %vm1259, %v803, %v2249
    %v2251 = vsel %vm1262, %v810, %v2250
    %v2252 = vsel %vm1265, %v817, %v2251
    %v2253 = vsel %vm1247, %v831, %v824
    %v2254 = vsel %vm1250, %v838, %v2253
    %v2255 = vsel %vm1253, %v845, %v2254
    %v2256 = vsel %vm1256, %v852, %v2255
    %v2257 = vsel %vm1259, %v859, %v2256
    %v2258 = vsel %vm1262, %v866, %v2257
    %v2259 = vsel %vm1265, %v873, %v2258
    %v2260 = vsel %vm1247, %v887, %v880
    %v2261 = vsel %vm1250, %v894, %v2260
    %v2262 = vsel %vm1253, %v901, %v2261
    %v2263 = vsel %vm1256, %v908, %v2262
    %v2264 = vsel %vm1259, %v915, %v2263
    %v2265 = vsel %vm1262, %v922, %v2264
    %v2266 = vsel %vm1265, %v929, %v2265
    %v2267 = vsel %vm1247, %v943, %v936
    %v2268 = vsel %vm1250, %v950, %v2267
    %v2269 = vsel %vm1253, %v957, %v2268
    %v2270 = vsel %vm1256, %v964, %v2269
    %v2271 = vsel %vm1259, %v971, %v2270
    %v2272 = vsel %vm1262, %v978, %v2271
    %v2273 = vsel %vm1265, %v985, %v2272
    %v2274 = vsel %vm1247, %v999, %v992
    %v2275 = vsel %vm1250, %v1006, %v2274
    %v2276 = vsel %vm1253, %v1013, %v2275
    %v2277 = vsel %vm1256, %v1020, %v2276
    %v2278 = vsel %vm1259, %v1027, %v2277
    %v2279 = vsel %vm1262, %v1034, %v2278
    %v2280 = vsel %vm1265, %v1041, %v2279
    %v2281 = vsel %vm1247, %v1055, %v1048
    %v2282 = vsel %vm1250, %v1062, %v2281
    %v2283 = vsel %vm1253, %v1069, %v2282
    %v2284 = vsel %vm1256, %v1076, %v2283
    %v2285 = vsel %vm1259, %v1083, %v2284
    %v2286 = vsel %vm1262, %v1090, %v2285
    %v2287 = vsel %vm1265, %v1097, %v2286
    %v2288 = vsel %vm1247, %v1111, %v1104
    %v2289 = vsel %vm1250, %v1118, %v2288
    %v2290 = vsel %vm1253, %v1125, %v2289
    %v2291 = vsel %vm1256, %v1132, %v2290
    %v2292 = vsel %vm1259, %v1139, %v2291
    %v2293 = vsel %vm1262, %v1146, %v2292
    %v2294 = vsel %vm1265, %v1153, %v2293
    %v2295 = vsel %vm1247, %v1167, %v1160
    %v2296 = vsel %vm1250, %v1174, %v2295
    %v2297 = vsel %vm1253, %v1181, %v2296
    %2298 = vrot.lane.b32.xlu0 %v2245, 16
    %v2299 = vpop.permute.xlu0 %2298
    %2300 = vrot.lane.b32.xlu0 %v2252, 16
    %v2301 = vpop.permute.xlu0 %2300
    %2302 = vrot.lane.b32.xlu0 %v2259, 16
    %v2303 = vpop.permute.xlu0 %2302
    %2304 = vrot.lane.b32.xlu0 %v2266, 16
    %v2305 = vpop.permute.xlu0 %2304
    %2306 = vrot.lane.b32.xlu0 %v2273, 16
    %v2307 = vpop.permute.xlu0 %2306
    %2308 = vrot.lane.b32.xlu0 %v2280, 16
    %v2309 = vpop.permute.xlu0 %2308
    %2310 = vrot.lane.b32.xlu0 %v2287, 16
    %v2311 = vpop.permute.xlu0 %2310
    %2312 = vrot.lane.b32.xlu0 %v2294, 16
    %v2313 = vpop.permute.xlu0 %2312
    %2314 = vrot.lane.b32.xlu0 %v2297, 16
    %v2315 = vpop.permute.xlu0 %2314
    %v2325 = vsel %vm733, %v2181, %v2299
    %v2326 = vsel %vm733, %v2188, %v2301
    %v2327 = vsel %vm733, %v2195, %v2303
    %v2328 = vsel %vm733, %v2202, %v2305
    %v2329 = vsel %vm733, %v2209, %v2307
    %v2330 = vsel %vm733, %v2216, %v2309
    %v2331 = vsel %vm733, %v2223, %v2311
    %v2332 = vsel %vm733, %v2230, %v2313
    %v2333 = vsel %vm733, %v2233, %v2315
    %v2343 = vrot.slane %v2325, 4
    %v2344 = vrot.slane %v2326, 4
    %v2345 = vsel %vm280, %v2343, %v2344
    %v2346 = vrot.slane %v2327, 4
    %v2347 = vsel %vm280, %v2344, %v2346
    %v2348 = vrot.slane %v2328, 4
    %v2349 = vsel %vm280, %v2346, %v2348
    %v2350 = vrot.slane %v2329, 4
    %v2351 = vsel %vm280, %v2348, %v2350
    %v2352 = vrot.slane %v2330, 4
    %v2353 = vsel %vm280, %v2350, %v2352
    %v2354 = vrot.slane %v2331, 4
    %v2355 = vsel %vm280, %v2352, %v2354
    %v2356 = vrot.slane %v2332, 4
    %v2357 = vsel %vm280, %v2354, %v2356
    %v2358 = vrot.slane %v2333, 4
    %v2359 = vsel %vm280, %v2356, %v2358
    %2368 = vst.msk [vmem:[#allocation2 + $0x8] sm:$0xff] %vm1525, %v2345
    %2369 = vst.msk [vmem:[#allocation2 + $0x18] sm:$0xff] %vm1525, %v2347
    %2370 = vst.msk [vmem:[#allocation2 + $0x28] sm:$0xff] %vm1525, %v2349
    %2371 = vst.msk [vmem:[#allocation2 + $0x38] sm:$0xff] %vm1525, %v2351
    %2372 = vst.msk [vmem:[#allocation2 + $0x48] sm:$0xff] %vm1525, %v2353
    %2373 = vst.msk [vmem:[#allocation2 + $0x58] sm:$0xff] %vm1525, %v2355
    %2374 = vst.msk [vmem:[#allocation2 + $0x68] sm:$0xff] %vm1525, %v2357
    %2375 = vst.msk [vmem:[#allocation2 + $0x78] sm:$0xff] %vm1525, %v2359
    %v2376 = vsel %vm1262, %v1246, %v669
    %v2377 = vsel %vm1265, %v1249, %v2376
    %v2378 = vsel %vm1247, %v1255, %v1252
    %v2379 = vsel %vm1250, %v1258, %v2378
    %v2380 = vsel %vm1253, %v1261, %v2379
    %v2381 = vsel %vm1256, %v1264, %v2380
    %v2382 = vsel %vm1259, %v677, %v2381
    %v2383 = vsel %vm1262, %v1267, %v2382
    %v2384 = vsel %vm1265, %v1269, %v2383
    %v2385 = vsel %vm1247, %v1273, %v1271
    %v2386 = vsel %vm1250, %v1275, %v2385
    %v2387 = vsel %vm1253, %v1277, %v2386
    %v2388 = vsel %vm1256, %v1279, %v2387
    %v2389 = vsel %vm1259, %v685, %v2388
    %v2390 = vsel %vm1262, %v1281, %v2389
    %v2391 = vsel %vm1265, %v1283, %v2390
    %v2392 = vsel %vm1247, %v1287, %v1285
    %v2393 = vsel %vm1250, %v1289, %v2392
    %v2394 = vsel %vm1253, %v1291, %v2393
    %v2395 = vsel %vm1256, %v1293, %v2394
    %v2396 = vsel %vm1259, %v693, %v2395
    %v2397 = vsel %vm1262, %v1295, %v2396
    %v2398 = vsel %vm1265, %v1297, %v2397
    %v2399 = vsel %vm1247, %v1301, %v1299
    %v2400 = vsel %vm1250, %v1303, %v2399
    %v2401 = vsel %vm1253, %v1305, %v2400
    %v2402 = vsel %vm1256, %v1307, %v2401
    %v2403 = vsel %vm1259, %v701, %v2402
    %v2404 = vsel %vm1262, %v1309, %v2403
    %v2405 = vsel %vm1265, %v1311, %v2404
    %v2406 = vsel %vm1247, %v1315, %v1313
    %v2407 = vsel %vm1250, %v1317, %v2406
    %v2408 = vsel %vm1253, %v1319, %v2407
    %v2409 = vsel %vm1256, %v1321, %v2408
    %v2410 = vsel %vm1259, %v709, %v2409
    %v2411 = vsel %vm1262, %v1323, %v2410
    %v2412 = vsel %vm1265, %v1325, %v2411
    %v2413 = vsel %vm1247, %v1329, %v1327
    %v2414 = vsel %vm1250, %v1331, %v2413
    %v2415 = vsel %vm1253, %v1333, %v2414
    %v2416 = vsel %vm1256, %v1335, %v2415
    %v2417 = vsel %vm1259, %v717, %v2416
    %v2418 = vsel %vm1262, %v1337, %v2417
    %v2419 = vsel %vm1265, %v1339, %v2418
    %v2420 = vsel %vm1247, %v1343, %v1341
    %v2421 = vsel %vm1250, %v1345, %v2420
    %v2422 = vsel %vm1253, %v1347, %v2421
    %v2423 = vsel %vm1256, %v1349, %v2422
    %v2424 = vsel %vm1259, %v725, %v2423
    %v2425 = vsel %vm1262, %v1351, %v2424
    %v2426 = vsel %vm1265, %v1353, %v2425
    %v2427 = vsel %vm1247, %v1357, %v1355
    %v2428 = vsel %vm1250, %v1359, %v2427
    %v2429 = vsel %vm1253, %v1361, %v2428
    %v2430 = vsel %vm1256, %v1363, %v2429
    %v2440 = vsel %vm1262, %v747, %v740
    %v2441 = vsel %vm1265, %v754, %v2440
    %v2442 = vsel %vm1247, %v768, %v761
    %v2443 = vsel %vm1250, %v775, %v2442
    %v2444 = vsel %vm1253, %v782, %v2443
    %v2445 = vsel %vm1256, %v789, %v2444
    %v2446 = vsel %vm1259, %v796, %v2445
    %v2447 = vsel %vm1262, %v803, %v2446
    %v2448 = vsel %vm1265, %v810, %v2447
    %v2449 = vsel %vm1247, %v824, %v817
    %v2450 = vsel %vm1250, %v831, %v2449
    %v2451 = vsel %vm1253, %v838, %v2450
    %v2452 = vsel %vm1256, %v845, %v2451
    %v2453 = vsel %vm1259, %v852, %v2452
    %v2454 = vsel %vm1262, %v859, %v2453
    %v2455 = vsel %vm1265, %v866, %v2454
    %v2456 = vsel %vm1247, %v880, %v873
    %v2457 = vsel %vm1250, %v887, %v2456
    %v2458 = vsel %vm1253, %v894, %v2457
    %v2459 = vsel %vm1256, %v901, %v2458
    %v2460 = vsel %vm1259, %v908, %v2459
    %v2461 = vsel %vm1262, %v915, %v2460
    %v2462 = vsel %vm1265, %v922, %v2461
    %v2463 = vsel %vm1247, %v936, %v929
    %v2464 = vsel %vm1250, %v943, %v2463
    %v2465 = vsel %vm1253, %v950, %v2464
    %v2466 = vsel %vm1256, %v957, %v2465
    %v2467 = vsel %vm1259, %v964, %v2466
    %v2468 = vsel %vm1262, %v971, %v2467
    %v2469 = vsel %vm1265, %v978, %v2468
    %v2470 = vsel %vm1247, %v992, %v985
    %v2471 = vsel %vm1250, %v999, %v2470
    %v2472 = vsel %vm1253, %v1006, %v2471
    %v2473 = vsel %vm1256, %v1013, %v2472
    %v2474 = vsel %vm1259, %v1020, %v2473
    %v2475 = vsel %vm1262, %v1027, %v2474
    %v2476 = vsel %vm1265, %v1034, %v2475
    %v2477 = vsel %vm1247, %v1048, %v1041
    %v2478 = vsel %vm1250, %v1055, %v2477
    %v2479 = vsel %vm1253, %v1062, %v2478
    %v2480 = vsel %vm1256, %v1069, %v2479
    %v2481 = vsel %vm1259, %v1076, %v2480
    %v2482 = vsel %vm1262, %v1083, %v2481
    %v2483 = vsel %vm1265, %v1090, %v2482
    %v2484 = vsel %vm1247, %v1104, %v1097
    %v2485 = vsel %vm1250, %v1111, %v2484
    %v2486 = vsel %vm1253, %v1118, %v2485
    %v2487 = vsel %vm1256, %v1125, %v2486
    %v2488 = vsel %vm1259, %v1132, %v2487
    %v2489 = vsel %vm1262, %v1139, %v2488
    %v2490 = vsel %vm1265, %v1146, %v2489
    %v2491 = vsel %vm1247, %v1160, %v1153
    %v2492 = vsel %vm1250, %v1167, %v2491
    %v2493 = vsel %vm1253, %v1174, %v2492
    %v2494 = vsel %vm1256, %v1181, %v2493
    %2495 = vrot.lane.b32.xlu0 %v2441, 16
    %v2496 = vpop.permute.xlu0 %2495
    %2497 = vrot.lane.b32.xlu0 %v2448, 16
    %v2498 = vpop.permute.xlu0 %2497
    %2499 = vrot.lane.b32.xlu0 %v2455, 16
    %v2500 = vpop.permute.xlu0 %2499
    %2501 = vrot.lane.b32.xlu0 %v2462, 16
    %v2502 = vpop.permute.xlu0 %2501
    %2503 = vrot.lane.b32.xlu0 %v2469, 16
    %v2504 = vpop.permute.xlu0 %2503
    %2505 = vrot.lane.b32.xlu0 %v2476, 16
    %v2506 = vpop.permute.xlu0 %2505
    %2507 = vrot.lane.b32.xlu0 %v2483, 16
    %v2508 = vpop.permute.xlu0 %2507
    %2509 = vrot.lane.b32.xlu0 %v2490, 16
    %v2510 = vpop.permute.xlu0 %2509
    %2511 = vrot.lane.b32.xlu0 %v2494, 16
    %v2512 = vpop.permute.xlu0 %2511
    %v2522 = vsel %vm733, %v2377, %v2496
    %v2523 = vsel %vm733, %v2384, %v2498
    %v2524 = vsel %vm733, %v2391, %v2500
    %v2525 = vsel %vm733, %v2398, %v2502
    %v2526 = vsel %vm733, %v2405, %v2504
    %v2527 = vsel %vm733, %v2412, %v2506
    %v2528 = vsel %vm733, %v2419, %v2508
    %v2529 = vsel %vm733, %v2426, %v2510
    %v2530 = vsel %vm733, %v2430, %v2512
    %vm2540 = vcmask 1042432
    %v2541 = vrot.slane %v2522, 5
    %v2542 = vrot.slane %v2523, 5
    %v2543 = vsel %vm2540, %v2541, %v2542
    %v2544 = vrot.slane %v2524, 5
    %v2545 = vsel %vm2540, %v2542, %v2544
    %v2546 = vrot.slane %v2525, 5
    %v2547 = vsel %vm2540, %v2544, %v2546
    %v2548 = vrot.slane %v2526, 5
    %v2549 = vsel %vm2540, %v2546, %v2548
    %v2550 = vrot.slane %v2527, 5
    %v2551 = vsel %vm2540, %v2548, %v2550
    %v2552 = vrot.slane %v2528, 5
    %v2553 = vsel %vm2540, %v2550, %v2552
    %v2554 = vrot.slane %v2529, 5
    %v2555 = vsel %vm2540, %v2552, %v2554
    %v2556 = vrot.slane %v2530, 5
    %v2557 = vsel %vm2540, %v2554, %v2556
    %2558 = vrot.lane.b32.xlu0 %v2543, 32
    %v2559 = vpop.permute.xlu0 %2558
    %2560 = vrot.lane.b32.xlu0 %v2545, 32
    %v2561 = vpop.permute.xlu0 %2560
    %2562 = vrot.lane.b32.xlu0 %v2547, 32
    %v2563 = vpop.permute.xlu0 %2562
    %2564 = vrot.lane.b32.xlu0 %v2549, 32
    %v2565 = vpop.permute.xlu0 %2564
    %2566 = vrot.lane.b32.xlu0 %v2551, 32
    %v2567 = vpop.permute.xlu0 %2566
    %2568 = vrot.lane.b32.xlu0 %v2553, 32
    %v2569 = vpop.permute.xlu0 %2568
    %2570 = vrot.lane.b32.xlu0 %v2555, 32
    %v2571 = vpop.permute.xlu0 %2570
    %2572 = vrot.lane.b32.xlu0 %v2557, 32
    %v2573 = vpop.permute.xlu0 %2572
    %2582 = vst.msk [vmem:[#allocation2 + $0x8] sm:$0xff] %vm1740, %v2559
    %2583 = vst.msk [vmem:[#allocation2 + $0x18] sm:$0xff] %vm1740, %v2561
    %2584 = vst.msk [vmem:[#allocation2 + $0x28] sm:$0xff] %vm1740, %v2563
    %2585 = vst.msk [vmem:[#allocation2 + $0x38] sm:$0xff] %vm1740, %v2565
    %2586 = vst.msk [vmem:[#allocation2 + $0x48] sm:$0xff] %vm1740, %v2567
    %2587 = vst.msk [vmem:[#allocation2 + $0x58] sm:$0xff] %vm1740, %v2569
    %2588 = vst.msk [vmem:[#allocation2 + $0x68] sm:$0xff] %vm1740, %v2571
    %2589 = vst.msk [vmem:[#allocation2 + $0x78] sm:$0xff] %vm1740, %v2573
    %v2590 = vsel %vm1265, %v1246, %v669
    %v2591 = vsel %vm1247, %v1252, %v1249
    %v2592 = vsel %vm1250, %v1255, %v2591
    %v2593 = vsel %vm1253, %v1258, %v2592
    %v2594 = vsel %vm1256, %v1261, %v2593
    %v2595 = vsel %vm1259, %v1264, %v2594
    %v2596 = vsel %vm1262, %v677, %v2595
    %v2597 = vsel %vm1265, %v1267, %v2596
    %v2598 = vsel %vm1247, %v1271, %v1269
    %v2599 = vsel %vm1250, %v1273, %v2598
    %v2600 = vsel %vm1253, %v1275, %v2599
    %v2601 = vsel %vm1256, %v1277, %v2600
    %v2602 = vsel %vm1259, %v1279, %v2601
    %v2603 = vsel %vm1262, %v685, %v2602
    %v2604 = vsel %vm1265, %v1281, %v2603
    %v2605 = vsel %vm1247, %v1285, %v1283
    %v2606 = vsel %vm1250, %v1287, %v2605
    %v2607 = vsel %vm1253, %v1289, %v2606
    %v2608 = vsel %vm1256, %v1291, %v2607
    %v2609 = vsel %vm1259, %v1293, %v2608
    %v2610 = vsel %vm1262, %v693, %v2609
    %v2611 = vsel %vm1265, %v1295, %v2610
    %v2612 = vsel %vm1247, %v1299, %v1297
    %v2613 = vsel %vm1250, %v1301, %v2612
    %v2614 = vsel %vm1253, %v1303, %v2613
    %v2615 = vsel %vm1256, %v1305, %v2614
    %v2616 = vsel %vm1259, %v1307, %v2615
    %v2617 = vsel %vm1262, %v701, %v2616
    %v2618 = vsel %vm1265, %v1309, %v2617
    %v2619 = vsel %vm1247, %v1313, %v1311
    %v2620 = vsel %vm1250, %v1315, %v2619
    %v2621 = vsel %vm1253, %v1317, %v2620
    %v2622 = vsel %vm1256, %v1319, %v2621
    %v2623 = vsel %vm1259, %v1321, %v2622
    %v2624 = vsel %vm1262, %v709, %v2623
    %v2625 = vsel %vm1265, %v1323, %v2624
    %v2626 = vsel %vm1247, %v1327, %v1325
    %v2627 = vsel %vm1250, %v1329, %v2626
    %v2628 = vsel %vm1253, %v1331, %v2627
    %v2629 = vsel %vm1256, %v1333, %v2628
    %v2630 = vsel %vm1259, %v1335, %v2629
    %v2631 = vsel %vm1262, %v717, %v2630
    %v2632 = vsel %vm1265, %v1337, %v2631
    %v2633 = vsel %vm1247, %v1341, %v1339
    %v2634 = vsel %vm1250, %v1343, %v2633
    %v2635 = vsel %vm1253, %v1345, %v2634
    %v2636 = vsel %vm1256, %v1347, %v2635
    %v2637 = vsel %vm1259, %v1349, %v2636
    %v2638 = vsel %vm1262, %v725, %v2637
    %v2639 = vsel %vm1265, %v1351, %v2638
    %v2640 = vsel %vm1247, %v1355, %v1353
    %v2641 = vsel %vm1250, %v1357, %v2640
    %v2642 = vsel %vm1253, %v1359, %v2641
    %v2643 = vsel %vm1256, %v1361, %v2642
    %v2644 = vsel %vm1259, %v1363, %v2643
    %v2654 = vsel %vm1265, %v747, %v740
    %v2655 = vsel %vm1247, %v761, %v754
    %v2656 = vsel %vm1250, %v768, %v2655
    %v2657 = vsel %vm1253, %v775, %v2656
    %v2658 = vsel %vm1256, %v782, %v2657
    %v2659 = vsel %vm1259, %v789, %v2658
    %v2660 = vsel %vm1262, %v796, %v2659
    %v2661 = vsel %vm1265, %v803, %v2660
    %v2662 = vsel %vm1247, %v817, %v810
    %v2663 = vsel %vm1250, %v824, %v2662
    %v2664 = vsel %vm1253, %v831, %v2663
    %v2665 = vsel %vm1256, %v838, %v2664
    %v2666 = vsel %vm1259, %v845, %v2665
    %v2667 = vsel %vm1262, %v852, %v2666
    %v2668 = vsel %vm1265, %v859, %v2667
    %v2669 = vsel %vm1247, %v873, %v866
    %v2670 = vsel %vm1250, %v880, %v2669
    %v2671 = vsel %vm1253, %v887, %v2670
    %v2672 = vsel %vm1256, %v894, %v2671
    %v2673 = vsel %vm1259, %v901, %v2672
    %v2674 = vsel %vm1262, %v908, %v2673
    %v2675 = vsel %vm1265, %v915, %v2674
    %v2676 = vsel %vm1247, %v929, %v922
    %v2677 = vsel %vm1250, %v936, %v2676
    %v2678 = vsel %vm1253, %v943, %v2677
    %v2679 = vsel %vm1256, %v950, %v2678
    %v2680 = vsel %vm1259, %v957, %v2679
    %v2681 = vsel %vm1262, %v964, %v2680
    %v2682 = vsel %vm1265, %v971, %v2681
    %v2683 = vsel %vm1247, %v985, %v978
    %v2684 = vsel %vm1250, %v992, %v2683
    %v2685 = vsel %vm1253, %v999, %v2684
    %v2686 = vsel %vm1256, %v1006, %v2685
    %v2687 = vsel %vm1259, %v1013, %v2686
    %v2688 = vsel %vm1262, %v1020, %v2687
    %v2689 = vsel %vm1265, %v1027, %v2688
    %v2690 = vsel %vm1247, %v1041, %v1034
    %v2691 = vsel %vm1250, %v1048, %v2690
    %v2692 = vsel %vm1253, %v1055, %v2691
    %v2693 = vsel %vm1256, %v1062, %v2692
    %v2694 = vsel %vm1259, %v1069, %v2693
    %v2695 = vsel %vm1262, %v1076, %v2694
    %v2696 = vsel %vm1265, %v1083, %v2695
    %v2697 = vsel %vm1247, %v1097, %v1090
    %v2698 = vsel %vm1250, %v1104, %v2697
    %v2699 = vsel %vm1253, %v1111, %v2698
    %v2700 = vsel %vm1256, %v1118, %v2699
    %v2701 = vsel %vm1259, %v1125, %v2700
    %v2702 = vsel %vm1262, %v1132, %v2701
    %v2703 = vsel %vm1265, %v1139, %v2702
    %v2704 = vsel %vm1247, %v1153, %v1146
    %v2705 = vsel %vm1250, %v1160, %v2704
    %v2706 = vsel %vm1253, %v1167, %v2705
    %v2707 = vsel %vm1256, %v1174, %v2706
    %v2708 = vsel %vm1259, %v1181, %v2707
    %2709 = vrot.lane.b32.xlu0 %v2654, 16
    %v2710 = vpop.permute.xlu0 %2709
    %2711 = vrot.lane.b32.xlu0 %v2661, 16
    %v2712 = vpop.permute.xlu0 %2711
    %2713 = vrot.lane.b32.xlu0 %v2668, 16
    %v2714 = vpop.permute.xlu0 %2713
    %2715 = vrot.lane.b32.xlu0 %v2675, 16
    %v2716 = vpop.permute.xlu0 %2715
    %2717 = vrot.lane.b32.xlu0 %v2682, 16
    %v2718 = vpop.permute.xlu0 %2717
    %2719 = vrot.lane.b32.xlu0 %v2689, 16
    %v2720 = vpop.permute.xlu0 %2719
    %2721 = vrot.lane.b32.xlu0 %v2696, 16
    %v2722 = vpop.permute.xlu0 %2721
    %2723 = vrot.lane.b32.xlu0 %v2703, 16
    %v2724 = vpop.permute.xlu0 %2723
    %2725 = vrot.lane.b32.xlu0 %v2708, 16
    %v2726 = vpop.permute.xlu0 %2725
    %v2736 = vsel %vm733, %v2590, %v2710
    %v2737 = vsel %vm733, %v2597, %v2712
    %v2738 = vsel %vm733, %v2604, %v2714
    %v2739 = vsel %vm733, %v2611, %v2716
    %v2740 = vsel %vm733, %v2618, %v2718
    %v2741 = vsel %vm733, %v2625, %v2720
    %v2742 = vsel %vm733, %v2632, %v2722
    %v2743 = vsel %vm733, %v2639, %v2724
    %v2744 = vsel %vm733, %v2644, %v2726
    %vm2754 = vcmask 1041408
    %v2755 = vrot.slane %v2736, 6
    %v2756 = vrot.slane %v2737, 6
    %v2757 = vsel %vm2754, %v2755, %v2756
    %v2758 = vrot.slane %v2738, 6
    %v2759 = vsel %vm2754, %v2756, %v2758
    %v2760 = vrot.slane %v2739, 6
    %v2761 = vsel %vm2754, %v2758, %v2760
    %v2762 = vrot.slane %v2740, 6
    %v2763 = vsel %vm2754, %v2760, %v2762
    %v2764 = vrot.slane %v2741, 6
    %v2765 = vsel %vm2754, %v2762, %v2764
    %v2766 = vrot.slane %v2742, 6
    %v2767 = vsel %vm2754, %v2764, %v2766
    %v2768 = vrot.slane %v2743, 6
    %v2769 = vsel %vm2754, %v2766, %v2768
    %v2770 = vrot.slane %v2744, 6
    %v2771 = vsel %vm2754, %v2768, %v2770
    %2772 = vrot.lane.b32.xlu0 %v2757, 64
    %v2773 = vpop.permute.xlu0 %2772
    %2774 = vrot.lane.b32.xlu0 %v2759, 64
    %v2775 = vpop.permute.xlu0 %2774
    %2776 = vrot.lane.b32.xlu0 %v2761, 64
    %v2777 = vpop.permute.xlu0 %2776
    %2778 = vrot.lane.b32.xlu0 %v2763, 64
    %v2779 = vpop.permute.xlu0 %2778
    %2780 = vrot.lane.b32.xlu0 %v2765, 64
    %v2781 = vpop.permute.xlu0 %2780
    %2782 = vrot.lane.b32.xlu0 %v2767, 64
    %v2783 = vpop.permute.xlu0 %2782
    %2784 = vrot.lane.b32.xlu0 %v2769, 64
    %v2785 = vpop.permute.xlu0 %2784
    %2786 = vrot.lane.b32.xlu0 %v2771, 64
    %v2787 = vpop.permute.xlu0 %2786
    %2796 = vst.msk [vmem:[#allocation2 + $0x8] sm:$0xff] %vm1955, %v2773
    %2797 = vst.msk [vmem:[#allocation2 + $0x18] sm:$0xff] %vm1955, %v2775
    %2798 = vst.msk [vmem:[#allocation2 + $0x28] sm:$0xff] %vm1955, %v2777
    %2799 = vst.msk [vmem:[#allocation2 + $0x38] sm:$0xff] %vm1955, %v2779
    %2800 = vst.msk [vmem:[#allocation2 + $0x48] sm:$0xff] %vm1955, %v2781
    %2801 = vst.msk [vmem:[#allocation2 + $0x58] sm:$0xff] %vm1955, %v2783
    %2802 = vst.msk [vmem:[#allocation2 + $0x68] sm:$0xff] %vm1955, %v2785
    %2803 = vst.msk [vmem:[#allocation2 + $0x78] sm:$0xff] %vm1955, %v2787
    %v2804 = vsel %vm1247, %v1249, %v1246
    %v2805 = vsel %vm1250, %v1252, %v2804
    %v2806 = vsel %vm1253, %v1255, %v2805
    %v2807 = vsel %vm1256, %v1258, %v2806
    %v2808 = vsel %vm1259, %v1261, %v2807
    %v2809 = vsel %vm1262, %v1264, %v2808
    %v2810 = vsel %vm1265, %v677, %v2809
    %v2811 = vsel %vm1247, %v1269, %v1267
    %v2812 = vsel %vm1250, %v1271, %v2811
    %v2813 = vsel %vm1253, %v1273, %v2812
    %v2814 = vsel %vm1256, %v1275, %v2813
    %v2815 = vsel %vm1259, %v1277, %v2814
    %v2816 = vsel %vm1262, %v1279, %v2815
    %v2817 = vsel %vm1265, %v685, %v2816
    %v2818 = vsel %vm1247, %v1283, %v1281
    %v2819 = vsel %vm1250, %v1285, %v2818
    %v2820 = vsel %vm1253, %v1287, %v2819
    %v2821 = vsel %vm1256, %v1289, %v2820
    %v2822 = vsel %vm1259, %v1291, %v2821
    %v2823 = vsel %vm1262, %v1293, %v2822
    %v2824 = vsel %vm1265, %v693, %v2823
    %v2825 = vsel %vm1247, %v1297, %v1295
    %v2826 = vsel %vm1250, %v1299, %v2825
    %v2827 = vsel %vm1253, %v1301, %v2826
    %v2828 = vsel %vm1256, %v1303, %v2827
    %v2829 = vsel %vm1259, %v1305, %v2828
    %v2830 = vsel %vm1262, %v1307, %v2829
    %v2831 = vsel %vm1265, %v701, %v2830
    %v2832 = vsel %vm1247, %v1311, %v1309
    %v2833 = vsel %vm1250, %v1313, %v2832
    %v2834 = vsel %vm1253, %v1315, %v2833
    %v2835 = vsel %vm1256, %v1317, %v2834
    %v2836 = vsel %vm1259, %v1319, %v2835
    %v2837 = vsel %vm1262, %v1321, %v2836
    %v2838 = vsel %vm1265, %v709, %v2837
    %v2839 = vsel %vm1247, %v1325, %v1323
    %v2840 = vsel %vm1250, %v1327, %v2839
    %v2841 = vsel %vm1253, %v1329, %v2840
    %v2842 = vsel %vm1256, %v1331, %v2841
    %v2843 = vsel %vm1259, %v1333, %v2842
    %v2844 = vsel %vm1262, %v1335, %v2843
    %v2845 = vsel %vm1265, %v717, %v2844
    %v2846 = vsel %vm1247, %v1339, %v1337
    %v2847 = vsel %vm1250, %v1341, %v2846
    %v2848 = vsel %vm1253, %v1343, %v2847
    %v2849 = vsel %vm1256, %v1345, %v2848
    %v2850 = vsel %vm1259, %v1347, %v2849
    %v2851 = vsel %vm1262, %v1349, %v2850
    %v2852 = vsel %vm1265, %v725, %v2851
    %v2853 = vsel %vm1247, %v1353, %v1351
    %v2854 = vsel %vm1250, %v1355, %v2853
    %v2855 = vsel %vm1253, %v1357, %v2854
    %v2856 = vsel %vm1256, %v1359, %v2855
    %v2857 = vsel %vm1259, %v1361, %v2856
    %v2858 = vsel %vm1262, %v1363, %v2857
    %v2868 = vsel %vm1247, %v754, %v747
    %v2869 = vsel %vm1250, %v761, %v2868
    %v2870 = vsel %vm1253, %v768, %v2869
    %v2871 = vsel %vm1256, %v775, %v2870
    %v2872 = vsel %vm1259, %v782, %v2871
    %v2873 = vsel %vm1262, %v789, %v2872
    %v2874 = vsel %vm1265, %v796, %v2873
    %v2875 = vsel %vm1247, %v810, %v803
    %v2876 = vsel %vm1250, %v817, %v2875
    %v2877 = vsel %vm1253, %v824, %v2876
    %v2878 = vsel %vm1256, %v831, %v2877
    %v2879 = vsel %vm1259, %v838, %v2878
    %v2880 = vsel %vm1262, %v845, %v2879
    %v2881 = vsel %vm1265, %v852, %v2880
    %v2882 = vsel %vm1247, %v866, %v859
    %v2883 = vsel %vm1250, %v873, %v2882
    %v2884 = vsel %vm1253, %v880, %v2883
    %v2885 = vsel %vm1256, %v887, %v2884
    %v2886 = vsel %vm1259, %v894, %v2885
    %v2887 = vsel %vm1262, %v901, %v2886
    %v2888 = vsel %vm1265, %v908, %v2887
    %v2889 = vsel %vm1247, %v922, %v915
    %v2890 = vsel %vm1250, %v929, %v2889
    %v2891 = vsel %vm1253, %v936, %v2890
    %v2892 = vsel %vm1256, %v943, %v2891
    %v2893 = vsel %vm1259, %v950, %v2892
    %v2894 = vsel %vm1262, %v957, %v2893
    %v2895 = vsel %vm1265, %v964, %v2894
    %v2896 = vsel %vm1247, %v978, %v971
    %v2897 = vsel %vm1250, %v985, %v2896
    %v2898 = vsel %vm1253, %v992, %v2897
    %v2899 = vsel %vm1256, %v999, %v2898
    %v2900 = vsel %vm1259, %v1006, %v2899
    %v2901 = vsel %vm1262, %v1013, %v2900
    %v2902 = vsel %vm1265, %v1020, %v2901
    %v2903 = vsel %vm1247, %v1034, %v1027
    %v2904 = vsel %vm1250, %v1041, %v2903
    %v2905 = vsel %vm1253, %v1048, %v2904
    %v2906 = vsel %vm1256, %v1055, %v2905
    %v2907 = vsel %vm1259, %v1062, %v2906
    %v2908 = vsel %vm1262, %v1069, %v2907
    %v2909 = vsel %vm1265, %v1076, %v2908
    %v2910 = vsel %vm1247, %v1090, %v1083
    %v2911 = vsel %vm1250, %v1097, %v2910
    %v2912 = vsel %vm1253, %v1104, %v2911
    %v2913 = vsel %vm1256, %v1111, %v2912
    %v2914 = vsel %vm1259, %v1118, %v2913
    %v2915 = vsel %vm1262, %v1125, %v2914
    %v2916 = vsel %vm1265, %v1132, %v2915
    %v2917 = vsel %vm1247, %v1146, %v1139
    %v2918 = vsel %vm1250, %v1153, %v2917
    %v2919 = vsel %vm1253, %v1160, %v2918
    %v2920 = vsel %vm1256, %v1167, %v2919
    %v2921 = vsel %vm1259, %v1174, %v2920
    %v2922 = vsel %vm1262, %v1181, %v2921
    %2923 = vrot.lane.b32.xlu0 %v740, 16
    %v2924 = vpop.permute.xlu0 %2923
    %2925 = vrot.lane.b32.xlu0 %v2874, 16
    %v2926 = vpop.permute.xlu0 %2925
    %2927 = vrot.lane.b32.xlu0 %v2881, 16
    %v2928 = vpop.permute.xlu0 %2927
    %2929 = vrot.lane.b32.xlu0 %v2888, 16
    %v2930 = vpop.permute.xlu0 %2929
    %2931 = vrot.lane.b32.xlu0 %v2895, 16
    %v2932 = vpop.permute.xlu0 %2931
    %2933 = vrot.lane.b32.xlu0 %v2902, 16
    %v2934 = vpop.permute.xlu0 %2933
    %2935 = vrot.lane.b32.xlu0 %v2909, 16
    %v2936 = vpop.permute.xlu0 %2935
    %2937 = vrot.lane.b32.xlu0 %v2916, 16
    %v2938 = vpop.permute.xlu0 %2937
    %2939 = vrot.lane.b32.xlu0 %v2922, 16
    %v2940 = vpop.permute.xlu0 %2939
    %v2950 = vsel %vm733, %v669, %v2924
    %v2951 = vsel %vm733, %v2810, %v2926
    %v2952 = vsel %vm733, %v2817, %v2928
    %v2953 = vsel %vm733, %v2824, %v2930
    %v2954 = vsel %vm733, %v2831, %v2932
    %v2955 = vsel %vm733, %v2838, %v2934
    %v2956 = vsel %vm733, %v2845, %v2936
    %v2957 = vsel %vm733, %v2852, %v2938
    %v2958 = vsel %vm733, %v2858, %v2940
    %vm2968 = vcmask 1040384
    %v2969 = vrot.slane %v2950, 7
    %v2970 = vrot.slane %v2951, 7
    %v2971 = vsel %vm2968, %v2969, %v2970
    %v2972 = vrot.slane %v2952, 7
    %v2973 = vsel %vm2968, %v2970, %v2972
    %v2974 = vrot.slane %v2953, 7
    %v2975 = vsel %vm2968, %v2972, %v2974
    %v2976 = vrot.slane %v2954, 7
    %v2977 = vsel %vm2968, %v2974, %v2976
    %v2978 = vrot.slane %v2955, 7
    %v2979 = vsel %vm2968, %v2976, %v2978
    %v2980 = vrot.slane %v2956, 7
    %v2981 = vsel %vm2968, %v2978, %v2980
    %v2982 = vrot.slane %v2957, 7
    %v2983 = vsel %vm2968, %v2980, %v2982
    %v2984 = vrot.slane %v2958, 7
    %v2985 = vsel %vm2968, %v2982, %v2984
    %2986 = vrot.lane.b32.xlu0 %v2971, 96
    %v2987 = vpop.permute.xlu0 %2986
    %2988 = vrot.lane.b32.xlu0 %v2973, 96
    %v2989 = vpop.permute.xlu0 %2988
    %2990 = vrot.lane.b32.xlu0 %v2975, 96
    %v2991 = vpop.permute.xlu0 %2990
    %2992 = vrot.lane.b32.xlu0 %v2977, 96
    %v2993 = vpop.permute.xlu0 %2992
    %2994 = vrot.lane.b32.xlu0 %v2979, 96
    %v2995 = vpop.permute.xlu0 %2994
    %2996 = vrot.lane.b32.xlu0 %v2981, 96
    %v2997 = vpop.permute.xlu0 %2996
    %2998 = vrot.lane.b32.xlu0 %v2983, 96
    %v2999 = vpop.permute.xlu0 %2998
    %3000 = vrot.lane.b32.xlu0 %v2985, 96
    %v3001 = vpop.permute.xlu0 %3000
    %3010 = vst.msk [vmem:[#allocation2 + $0x8] sm:$0xff] %vm2170, %v2987
    %3011 = vst.msk [vmem:[#allocation2 + $0x18] sm:$0xff] %vm2170, %v2989
    %3012 = vst.msk [vmem:[#allocation2 + $0x28] sm:$0xff] %vm2170, %v2991
    %3013 = vst.msk [vmem:[#allocation2 + $0x38] sm:$0xff] %vm2170, %v2993
    %3014 = vst.msk [vmem:[#allocation2 + $0x48] sm:$0xff] %vm2170, %v2995
    %3015 = vst.msk [vmem:[#allocation2 + $0x58] sm:$0xff] %vm2170, %v2997
    %3016 = vst.msk [vmem:[#allocation2 + $0x68] sm:$0xff] %vm2170, %v2999
    %3017 = vst.msk [vmem:[#allocation2 + $0x78] sm:$0xff] %vm2170, %v3001
    // Predicated region
    $region14: #{tpu_custom_call.1} parent=1 // pred_check
      _
    $region15: #{tpu_custom_call.1} parent=1 // pred_check_branch
      %3019 = sbr.rel (0) target = $region17
    $region16: #{tpu_custom_call.1} parent=1 // pred_region
      %s3021 = ssub.s32 2048, 2048
      %3022 = vsyncadd [#allocation3], %s3021
      %s3023 = sshll.u32 [#allocation2], 4
      %s3024 = int_to_ptr.vmem [resolvable:$true] %s3023
      %3029 = dma.vmem_to_hbm [thread:$0]  %s3024, 2048, %s3, [#allocation3], 256, 256, 16
    $region17: #{tpu_custom_call.1} parent=1 // pred_fallthru
      _
    // Predicated region
    $region18: #{tpu_custom_call.1} parent=1 // pred_check
      _
    $region19: #{tpu_custom_call.1} parent=1 // pred_check_branch
      %3031 = sbr.rel (0) target = $region21
    $region20: #{tpu_custom_call.1} parent=1 // pred_region
      %3032 = dma.done [#allocation3], 2048
    $region21: #{tpu_custom_call.1} parent=1 // pred_fallthru
      _
    %3033 = vsyncpa [#allocation3], 1

</llo_original>
